<compile_context>
chip_gen: v7x
topology: tpu7x:2x2x1
jax: 0.10.0
libtpu: 0.0.40
codegen_flags: <defaults>
</compile_context>

<pallas_src>
import functools

import jax
import jax.numpy as jnp
from jax import lax
from jax.experimental import pallas as pl
from jax.experimental.pallas import tpu as pltpu


# ---------------------------------------------------------------------------
# Fused decoder kernel: input projection + LSTM recurrence + vocab projection
# ---------------------------------------------------------------------------
def decoder_kernel(x_ref, wih_ref, whh_ref, b_ref, wlin_ref, blin_ref,
                   out_ref, xg_ref, hist_ref, *, T, B):
    """x:(T*B,E)  W_ih^T:(E,4H)  W_hh^T:(H,4H)  b:(1,4H)  W_lin^T:(H,V)
    b_lin:(1,V)  out:(T*B,V) time-major logits.

    NOTE: the i/f/o gate columns of W_ih^T, W_hh^T and b arrive pre-scaled by
    0.5 (folded in at __init__), so sigmoid(z) == 0.5*tanh(gates) + 0.5 and
    all four gate nonlinearities cost ONE full-width tanh per step.
    """
    H = whh_ref.shape[0]

    # Phase 1 (non-recurrent): hoisted input projection for all T time steps
    # as a single MXU matmul; combined (pre-scaled) LSTM bias folded in.
    # Result parked in VMEM scratch so the unrolled loop doesn't pin vregs.
    xg_ref[...] = (jnp.dot(x_ref[...], wih_ref[...],
                           preferred_element_type=jnp.float32)
                   + b_ref[...])                                   # (T*B, 4H)

    w_hh = whh_ref[...]                                            # (H, 4H)

    # Hoisted constants: lane mask selecting the cell-candidate (g) gate,
    # which keeps tanh(x) (others get the sigmoid post-affine 0.5*t + 0.5).
    lane = lax.broadcasted_iota(jnp.int32, (B, 4 * H), 1)
    is_g = (lane >= 2 * H) & (lane < 3 * H)

    h = jnp.zeros((B, H), jnp.float32)   # zero init (init_hidden)
    c = jnp.zeros((B, H), jnp.float32)

    # Phase 2: serial recurrence (static T -> fully unrolled straight-line
    # code).  Only h @ W_hh^T + one tanh + cheap VPU work stays on the chain.
    # The loop-invariant RHS (w_hh) is hoisted by Mosaic; explicit
    # matmul_push_rhs/matmul_acc_lhs driving is intentionally not used here.
    for t in range(T):
        gates = xg_ref[t * B:(t + 1) * B, :] + jnp.dot(
            h, w_hh, preferred_element_type=jnp.float32)           # (B, 4H)
        t_all = jnp.tanh(gates)                                    # 1 EUP pass
        act = jnp.where(is_g, t_all, 0.5 * t_all + 0.5)
        # PyTorch gate order: input, forget, cell(g), output.
        i_g = act[:, 0 * H:1 * H]
        f_g = act[:, 1 * H:2 * H]
        g_g = act[:, 2 * H:3 * H]
        o_g = act[:, 3 * H:4 * H]
        c = f_g * c + i_g * g_g
        h = o_g * jnp.tanh(c)                                      # 1 EUP pass
        hist_ref[t * B:(t + 1) * B, :] = h        # spill h_t to VMEM scratch

    # Phase 3 (non-recurrent): hoisted vocab projection — one lane-dense
    # (T*B,H)x(H,V) MXU matmul + bias, one unmasked full-block store.
    out_ref[...] = (jnp.dot(hist_ref[...], wlin_ref[...],
                            preferred_element_type=jnp.float32)
                    + blin_ref[...]).astype(out_ref.dtype)


def fused_decoder(x2d, w_ih_t, w_hh_t, bias, w_lin_t, b_lin, *, T, B):
    E = x2d.shape[1]
    H = w_hh_t.shape[0]
    V = w_lin_t.shape[1]
    flops = 2 * T * B * (E * 4 * H + H * 4 * H + H * V)
    transcendentals = T * B * 5 * H
    bytes_accessed = 4 * (x2d.size + w_ih_t.size + w_hh_t.size + bias.size
                          + w_lin_t.size + b_lin.size + T * B * V)
    return pl.pallas_call(
        functools.partial(decoder_kernel, T=T, B=B),
        out_shape=jax.ShapeDtypeStruct((T * B, V), jnp.float32),
        grid_spec=pltpu.PrefetchScalarGridSpec(
            num_scalar_prefetch=0,
            grid=(1,),                    # recurrence lives entirely in-kernel
            in_specs=[
                pl.BlockSpec((T * B, E), lambda i: (0, 0)),     # all x
                pl.BlockSpec((E, 4 * H), lambda i: (0, 0)),     # W_ih^T (scaled)
                pl.BlockSpec((H, 4 * H), lambda i: (0, 0)),     # W_hh^T (scaled)
                pl.BlockSpec((1, 4 * H), lambda i: (0, 0)),     # b (scaled)
                pl.BlockSpec((H, V), lambda i: (0, 0)),         # W_lin^T
                pl.BlockSpec((1, V), lambda i: (0, 0)),         # b_lin
            ],
            out_specs=pl.BlockSpec((T * B, V), lambda i: (0, 0)),
            scratch_shapes=[
                pltpu.VMEM((T * B, 4 * H), jnp.float32),        # xg scratch
                pltpu.VMEM((T * B, H), jnp.float32),            # h history
            ]),
        compiler_params=pltpu.CompilerParams(
            dimension_semantics=("arbitrary",)),
        cost_estimate=pl.CostEstimate(flops=flops,
                                      transcendentals=transcendentals,
                                      bytes_accessed=bytes_accessed),
    )(x2d, w_ih_t, w_hh_t, bias, w_lin_t, b_lin)


# ---------------------------------------------------------------------------
# Jitted forward (embedding gather + concat + fused kernel, one dispatch)
# ---------------------------------------------------------------------------
@jax.jit
def decoder_forward(embedding, w_ih_t, w_hh_t, bias, w_lin_t, b_lin,
                    features, captions):
    B, E = features.shape
    # Teacher forcing: caption[:-1].  Gather embeddings directly time-major by
    # transposing the tiny (B, L-1) index array (no activation transpose).
    ids_tm = jnp.transpose(captions[:, :-1])                     # (L-1, B)
    emb_tm = embedding[ids_tm]                                   # (L-1, B, E)
    seq_tm = jnp.concatenate([features[None, :, :], emb_tm], axis=0)  # (T,B,E)
    T = seq_tm.shape[0]
    x2d = seq_tm.reshape(T * B, E)
    out_2d = fused_decoder(x2d, w_ih_t, w_hh_t, bias, w_lin_t, b_lin, T=T, B=B)
    V = out_2d.shape[1]
    # (T*B, V) -> (B, T, V): 32 KB reshape+swap fused under this jit.
    return jnp.swapaxes(out_2d.reshape(T, B, V), 0, 1)


# ---------------------------------------------------------------------------
# DecoderRNN equivalent (deterministic synthetic parameters)
# ---------------------------------------------------------------------------
class DecoderRNNPallas:
    def __init__(self, embed_size, hidden_size, vocab_size, batch_size, key):
        self.hidden_size = hidden_size
        self.batch_size = batch_size
        k = iter(jax.random.split(key, 8))
        bound = 1.0 / (hidden_size ** 0.5)
        H = hidden_size
        # nn.Embedding(vocab_size, embed_size): N(0, 1)
        self.embedding = jax.random.normal(next(k), (vocab_size, embed_size),
                                           jnp.float32)
        # nn.LSTM params: U(-1/sqrt(H), 1/sqrt(H))
        self.w_ih = jax.random.uniform(next(k), (4 * H, embed_size),
                                       jnp.float32, -bound, bound)
        self.w_hh = jax.random.uniform(next(k), (4 * H, H),
                                       jnp.float32, -bound, bound)
        self.b_ih = jax.random.uniform(next(k), (4 * H,),
                                       jnp.float32, -bound, bound)
        self.b_hh = jax.random.uniform(next(k), (4 * H,),
                                       jnp.float32, -bound, bound)
        # nn.Linear(hidden_size, vocab_size)
        self.w_lin = jax.random.uniform(next(k), (vocab_size, H),
                                        jnp.float32, -bound, bound)
        self.b_lin = jax.random.uniform(next(k), (vocab_size,),
                                        jnp.float32, -bound, bound)
        # One-time prep moved out of forward: pre-transposed weights laid out
        # for lane-dense MXU matmuls, with the sigmoid half-scaling (for the
        # i/f/o gate columns) folded in so the kernel only needs ONE full-vreg
        # tanh per step:  sigmoid(z) = 0.5 * tanh(0.5*z) + 0.5.
        gate_scale = jnp.concatenate([
            jnp.full((H,), 0.5, jnp.float32),   # i  (sigmoid)
            jnp.full((H,), 0.5, jnp.float32),   # f  (sigmoid)
            jnp.ones((H,), jnp.float32),        # g  (tanh)
            jnp.full((H,), 0.5, jnp.float32),   # o  (sigmoid)
        ])
        self.w_ih_t = jnp.transpose(self.w_ih) * gate_scale[None, :]   # (E,4H)
        self.w_hh_t = jnp.transpose(self.w_hh) * gate_scale[None, :]   # (H,4H)
        self.bias = ((self.b_ih + self.b_hh) * gate_scale).reshape(1, -1)
        self.w_lin_t = jnp.transpose(self.w_lin)                       # (H, V)
        self.b_lin_2d = self.b_lin.reshape(1, -1)

    def forward(self, features, captions):
        """features: (B, embed_size) f32, captions: (B, L) int32 -> (B, L, V)."""
        return decoder_forward(self.embedding, self.w_ih_t, self.w_hh_t,
                               self.bias, self.w_lin_t, self.b_lin_2d,
                               features, captions)


# ---------------------------------------------------------------------------
# Pure-JAX reference (for a sanity check); HIGHEST-precision matmuls so the
# comparison tolerance can be tight.
# ---------------------------------------------------------------------------
def reference_forward(model, features, captions):
    hp = jax.lax.Precision.HIGHEST
    emb = model.embedding[captions[:, :-1]]
    seq = jnp.concatenate([features[:, None, :], emb], axis=1)
    B, T, E = seq.shape
    H = model.hidden_size
    h = jnp.zeros((B, H), jnp.float32)
    c = jnp.zeros((B, H), jnp.float32)
    bias = model.b_ih + model.b_hh
    outs = []
    for t in range(T):
        gates = (jnp.dot(seq[:, t], model.w_ih.T, precision=hp)
                 + jnp.dot(h, model.w_hh.T, precision=hp) + bias)
        i_g = jax.nn.sigmoid(gates[:, 0 * H:1 * H])
        f_g = jax.nn.sigmoid(gates[:, 1 * H:2 * H])
        g_g = jnp.tanh(gates[:, 2 * H:3 * H])
        o_g = jax.nn.sigmoid(gates[:, 3 * H:4 * H])
        c = f_g * c + i_g * g_g
        h = o_g * jnp.tanh(c)
        outs.append(h)
    h_bf = jnp.stack(outs, axis=1)                     # (B, T, H)
    return jnp.dot(h_bf, model.w_lin.T, precision=hp) + model.b_lin


if __name__ == "__main__":
    embed_size, hidden_size, vocab_size = 32, 32, 128
    batch_size, caption_len = 8, 8        # LSTM sequence length T = caption_len

    key = jax.random.PRNGKey(0)
    k_model, k_feat, k_cap = jax.random.split(key, 3)

    model = DecoderRNNPallas(embed_size, hidden_size, vocab_size,
                             batch_size, k_model)
    features = jax.random.normal(k_feat, (batch_size, embed_size), jnp.float32)
    captions = jax.random.randint(k_cap, (batch_size, caption_len),
                                  0, vocab_size, jnp.int32)

    out = jax.block_until_ready(model.forward(features, captions))
    assert out.shape == (batch_size, caption_len, vocab_size), out.shape

    ref = jax.block_until_ready(reference_forward(model, features, captions))
    assert jnp.allclose(out, ref, rtol=1e-4, atol=1e-4), (
        float(jnp.max(jnp.abs(out - ref))))

    print("KERNEL_OK")
</pallas_src>

<mosaic_0001>
module attributes {stable_mosaic.version = 11 : i64} {
  func.func @decoder_kernel(%arg0: i32, %arg1: memref<64x32xf32, #tpu.memory_space<vmem>>, %arg2: memref<32x128xf32, #tpu.memory_space<vmem>>, %arg3: memref<32x128xf32, #tpu.memory_space<vmem>>, %arg4: memref<1x128xf32, #tpu.memory_space<vmem>>, %arg5: memref<32x128xf32, #tpu.memory_space<vmem>>, %arg6: memref<1x128xf32, #tpu.memory_space<vmem>>, %arg7: memref<64x128xf32, #tpu.memory_space<vmem>>, %arg8: memref<64x128xf32, #tpu.memory_space<vmem>>, %arg9: memref<64x32xf32, #tpu.memory_space<vmem>>) attributes {dimension_semantics = [#tpu.dimension_semantics<arbitrary>], iteration_bounds = array<i64: 1>, scalar_prefetch = 0 : i64, scratch_operands = 2 : i64, tpu.core_type = #tpu.core_type<tc>, window_params = [{pipeline_mode = #tpu.pipeline_mode<synchronous>, transform_indices = @transform_0, window_bounds = array<i64: 64, 32>}, {pipeline_mode = #tpu.pipeline_mode<synchronous>, transform_indices = @transform_1, window_bounds = array<i64: 32, 128>}, {pipeline_mode = #tpu.pipeline_mode<synchronous>, transform_indices = @transform_2, window_bounds = array<i64: 32, 128>}, {pipeline_mode = #tpu.pipeline_mode<synchronous>, transform_indices = @transform_3, window_bounds = array<i64: 1, 128>}, {pipeline_mode = #tpu.pipeline_mode<synchronous>, transform_indices = @transform_4, window_bounds = array<i64: 32, 128>}, {pipeline_mode = #tpu.pipeline_mode<synchronous>, transform_indices = @transform_5, window_bounds = array<i64: 1, 128>}, {pipeline_mode = #tpu.pipeline_mode<synchronous>, transform_indices = @transform_6, window_bounds = array<i64: 64, 128>}]} {
    %c0 = arith.constant 0 : index
    %c0_0 = arith.constant 0 : index
    %0 = vector.load %arg1[%c0, %c0_0] : memref<64x32xf32, #tpu.memory_space<vmem>>, vector<64x32xf32>
    %c0_1 = arith.constant 0 : index
    %c0_2 = arith.constant 0 : index
    %1 = vector.load %arg2[%c0_1, %c0_2] : memref<32x128xf32, #tpu.memory_space<vmem>>, vector<32x128xf32>
    %cst = arith.constant dense<0.000000e+00> : vector<64x128xf32>
    %2 = tpu.matmul %0, %1, %cst {dimension_numbers = #tpu.dot_dimension_numbers<[1], [0], [0], [1], [0, 0, 1, 1], [], []>} : vector<64x32xf32>, vector<32x128xf32>, vector<64x128xf32> -> vector<64x128xf32>
    %c0_3 = arith.constant 0 : index
    %c0_4 = arith.constant 0 : index
    %3 = vector.load %arg4[%c0_3, %c0_4] : memref<1x128xf32, #tpu.memory_space<vmem>>, vector<1x128xf32>
    %4 = vector.broadcast %3 : vector<1x128xf32> to vector<64x128xf32>
    %5 = arith.addf %2, %4 : vector<64x128xf32>
    %c0_5 = arith.constant 0 : index
    %c0_6 = arith.constant 0 : index
    %6 = vector.load %arg8[%c0_5, %c0_6] : memref<64x128xf32, #tpu.memory_space<vmem>>, vector<64x128xf32>
    tpu.vector_store %arg8[%c0_5, %c0_6], %5 {strides = array<i32>} : memref<64x128xf32, #tpu.memory_space<vmem>>, vector<64x128xf32>,
    %c0_7 = arith.constant 0 : index
    %c0_8 = arith.constant 0 : index
    %7 = vector.load %arg3[%c0_7, %c0_8] : memref<32x128xf32, #tpu.memory_space<vmem>>, vector<32x128xf32>
    %8 = tpu.iota {dimensions = array<i32: 1>} : vector<8x128xi32>
    %c64_i32 = arith.constant 64 : i32
    %9 = vector.broadcast %c64_i32 : i32 to vector<8x128xi32>
    %10 = arith.cmpi sge, %8, %9 : vector<8x128xi32>
    %c96_i32 = arith.constant 96 : i32
    %11 = vector.broadcast %c96_i32 : i32 to vector<8x128xi32>
    %12 = arith.cmpi slt, %8, %11 : vector<8x128xi32>
    %13 = arith.andi %10, %12 : vector<8x128xi1>
    %cst_9 = arith.constant 0.000000e+00 : f32
    %14 = vector.broadcast %cst_9 : f32 to vector<8x32xf32>
    %cst_10 = arith.constant 0.000000e+00 : f32
    %15 = vector.broadcast %cst_10 : f32 to vector<8x32xf32>
    %c0_11 = arith.constant 0 : index
    %c0_12 = arith.constant 0 : index
    %16 = vector.load %arg8[%c0_11, %c0_12] : memref<64x128xf32, #tpu.memory_space<vmem>>, vector<8x128xf32>
    %cst_13 = arith.constant dense<0.000000e+00> : vector<8x128xf32>
    %17 = tpu.matmul %14, %7, %cst_13 {dimension_numbers = #tpu.dot_dimension_numbers<[1], [0], [0], [1], [0, 0, 1, 1], [], []>} : vector<8x32xf32>, vector<32x128xf32>, vector<8x128xf32> -> vector<8x128xf32>
    %18 = arith.addf %16, %17 : vector<8x128xf32>
    %19 = math.tanh %18 : vector<8x128xf32>
    %cst_14 = arith.constant 5.000000e-01 : f32
    %20 = vector.broadcast %cst_14 : f32 to vector<8x128xf32>
    %21 = arith.mulf %20, %19 : vector<8x128xf32>
    %cst_15 = arith.constant 5.000000e-01 : f32
    %22 = vector.broadcast %cst_15 : f32 to vector<8x128xf32>
    %23 = arith.addf %21, %22 : vector<8x128xf32>
    %24 = arith.select %13, %19, %23 : vector<8x128xi1>, vector<8x128xf32>
    %25 = vector.extract_strided_slice %24 {offsets = [0, 0], sizes = [8, 32], strides = [1, 1]} : vector<8x128xf32> to vector<8x32xf32>
    %26 = vector.extract_strided_slice %24 {offsets = [0, 32], sizes = [8, 32], strides = [1, 1]} : vector<8x128xf32> to vector<8x32xf32>
    %27 = vector.extract_strided_slice %24 {offsets = [0, 64], sizes = [8, 32], strides = [1, 1]} : vector<8x128xf32> to vector<8x32xf32>
    %28 = vector.extract_strided_slice %24 {offsets = [0, 96], sizes = [8, 32], strides = [1, 1]} : vector<8x128xf32> to vector<8x32xf32>
    %29 = arith.mulf %26, %15 : vector<8x32xf32>
    %30 = arith.mulf %25, %27 : vector<8x32xf32>
    %31 = arith.addf %29, %30 : vector<8x32xf32>
    %32 = math.tanh %31 : vector<8x32xf32>
    %33 = arith.mulf %28, %32 : vector<8x32xf32>
    %c0_16 = arith.constant 0 : index
    %c0_17 = arith.constant 0 : index
    %34 = vector.load %arg9[%c0_16, %c0_17] : memref<64x32xf32, #tpu.memory_space<vmem>>, vector<8x32xf32>
    tpu.vector_store %arg9[%c0_16, %c0_17], %33 {strides = array<i32>} : memref<64x32xf32, #tpu.memory_space<vmem>>, vector<8x32xf32>,
    %c8 = arith.constant 8 : index
    %c0_18 = arith.constant 0 : index
    %35 = vector.load %arg8[%c8, %c0_18] : memref<64x128xf32, #tpu.memory_space<vmem>>, vector<8x128xf32>
    %cst_19 = arith.constant dense<0.000000e+00> : vector<8x128xf32>
    %36 = tpu.matmul %33, %7, %cst_19 {dimension_numbers = #tpu.dot_dimension_numbers<[1], [0], [0], [1], [0, 0, 1, 1], [], []>} : vector<8x32xf32>, vector<32x128xf32>, vector<8x128xf32> -> vector<8x128xf32>
    %37 = arith.addf %35, %36 : vector<8x128xf32>
    %38 = math.tanh %37 : vector<8x128xf32>
    %cst_20 = arith.constant 5.000000e-01 : f32
    %39 = vector.broadcast %cst_20 : f32 to vector<8x128xf32>
    %40 = arith.mulf %39, %38 : vector<8x128xf32>
    %cst_21 = arith.constant 5.000000e-01 : f32
    %41 = vector.broadcast %cst_21 : f32 to vector<8x128xf32>
    %42 = arith.addf %40, %41 : vector<8x128xf32>
    %43 = arith.select %13, %38, %42 : vector<8x128xi1>, vector<8x128xf32>
    %44 = vector.extract_strided_slice %43 {offsets = [0, 0], sizes = [8, 32], strides = [1, 1]} : vector<8x128xf32> to vector<8x32xf32>
    %45 = vector.extract_strided_slice %43 {offsets = [0, 32], sizes = [8, 32], strides = [1, 1]} : vector<8x128xf32> to vector<8x32xf32>
    %46 = vector.extract_strided_slice %43 {offsets = [0, 64], sizes = [8, 32], strides = [1, 1]} : vector<8x128xf32> to vector<8x32xf32>
    %47 = vector.extract_strided_slice %43 {offsets = [0, 96], sizes = [8, 32], strides = [1, 1]} : vector<8x128xf32> to vector<8x32xf32>
    %48 = arith.mulf %45, %31 : vector<8x32xf32>
    %49 = arith.mulf %44, %46 : vector<8x32xf32>
    %50 = arith.addf %48, %49 : vector<8x32xf32>
    %51 = math.tanh %50 : vector<8x32xf32>
    %52 = arith.mulf %47, %51 : vector<8x32xf32>
    %c8_22 = arith.constant 8 : index
    %c0_23 = arith.constant 0 : index
    %53 = vector.load %arg9[%c8_22, %c0_23] : memref<64x32xf32, #tpu.memory_space<vmem>>, vector<8x32xf32>
    tpu.vector_store %arg9[%c8_22, %c0_23], %52 {strides = array<i32>} : memref<64x32xf32, #tpu.memory_space<vmem>>, vector<8x32xf32>,
    %c16 = arith.constant 16 : index
    %c0_24 = arith.constant 0 : index
    %54 = vector.load %arg8[%c16, %c0_24] : memref<64x128xf32, #tpu.memory_space<vmem>>, vector<8x128xf32>
    %cst_25 = arith.constant dense<0.000000e+00> : vector<8x128xf32>
    %55 = tpu.matmul %52, %7, %cst_25 {dimension_numbers = #tpu.dot_dimension_numbers<[1], [0], [0], [1], [0, 0, 1, 1], [], []>} : vector<8x32xf32>, vector<32x128xf32>, vector<8x128xf32> -> vector<8x128xf32>
    %56 = arith.addf %54, %55 : vector<8x128xf32>
    %57 = math.tanh %56 : vector<8x128xf32>
    %cst_26 = arith.constant 5.000000e-01 : f32
    %58 = vector.broadcast %cst_26 : f32 to vector<8x128xf32>
    %59 = arith.mulf %58, %57 : vector<8x128xf32>
    %cst_27 = arith.constant 5.000000e-01 : f32
    %60 = vector.broadcast %cst_27 : f32 to vector<8x128xf32>
    %61 = arith.addf %59, %60 : vector<8x128xf32>
    %62 = arith.select %13, %57, %61 : vector<8x128xi1>, vector<8x128xf32>
    %63 = vector.extract_strided_slice %62 {offsets = [0, 0], sizes = [8, 32], strides = [1, 1]} : vector<8x128xf32> to vector<8x32xf32>
    %64 = vector.extract_strided_slice %62 {offsets = [0, 32], sizes = [8, 32], strides = [1, 1]} : vector<8x128xf32> to vector<8x32xf32>
    %65 = vector.extract_strided_slice %62 {offsets = [0, 64], sizes = [8, 32], strides = [1, 1]} : vector<8x128xf32> to vector<8x32xf32>
    %66 = vector.extract_strided_slice %62 {offsets = [0, 96], sizes = [8, 32], strides = [1, 1]} : vector<8x128xf32> to vector<8x32xf32>
    %67 = arith.mulf %64, %50 : vector<8x32xf32>
    %68 = arith.mulf %63, %65 : vector<8x32xf32>
    %69 = arith.addf %67, %68 : vector<8x32xf32>
    %70 = math.tanh %69 : vector<8x32xf32>
    %71 = arith.mulf %66, %70 : vector<8x32xf32>
    %c16_28 = arith.constant 16 : index
    %c0_29 = arith.constant 0 : index
    %72 = vector.load %arg9[%c16_28, %c0_29] : memref<64x32xf32, #tpu.memory_space<vmem>>, vector<8x32xf32>
    tpu.vector_store %arg9[%c16_28, %c0_29], %71 {strides = array<i32>} : memref<64x32xf32, #tpu.memory_space<vmem>>, vector<8x32xf32>,
    %c24 = arith.constant 24 : index
    %c0_30 = arith.constant 0 : index
    %73 = vector.load %arg8[%c24, %c0_30] : memref<64x128xf32, #tpu.memory_space<vmem>>, vector<8x128xf32>
    %cst_31 = arith.constant dense<0.000000e+00> : vector<8x128xf32>
    %74 = tpu.matmul %71, %7, %cst_31 {dimension_numbers = #tpu.dot_dimension_numbers<[1], [0], [0], [1], [0, 0, 1, 1], [], []>} : vector<8x32xf32>, vector<32x128xf32>, vector<8x128xf32> -> vector<8x128xf32>
    %75 = arith.addf %73, %74 : vector<8x128xf32>
    %76 = math.tanh %75 : vector<8x128xf32>
    %cst_32 = arith.constant 5.000000e-01 : f32
    %77 = vector.broadcast %cst_32 : f32 to vector<8x128xf32>
    %78 = arith.mulf %77, %76 : vector<8x128xf32>
    %cst_33 = arith.constant 5.000000e-01 : f32
    %79 = vector.broadcast %cst_33 : f32 to vector<8x128xf32>
    %80 = arith.addf %78, %79 : vector<8x128xf32>
    %81 = arith.select %13, %76, %80 : vector<8x128xi1>, vector<8x128xf32>
    %82 = vector.extract_strided_slice %81 {offsets = [0, 0], sizes = [8, 32], strides = [1, 1]} : vector<8x128xf32> to vector<8x32xf32>
    %83 = vector.extract_strided_slice %81 {offsets = [0, 32], sizes = [8, 32], strides = [1, 1]} : vector<8x128xf32> to vector<8x32xf32>
    %84 = vector.extract_strided_slice %81 {offsets = [0, 64], sizes = [8, 32], strides = [1, 1]} : vector<8x128xf32> to vector<8x32xf32>
    %85 = vector.extract_strided_slice %81 {offsets = [0, 96], sizes = [8, 32], strides = [1, 1]} : vector<8x128xf32> to vector<8x32xf32>
    %86 = arith.mulf %83, %69 : vector<8x32xf32>
    %87 = arith.mulf %82, %84 : vector<8x32xf32>
    %88 = arith.addf %86, %87 : vector<8x32xf32>
    %89 = math.tanh %88 : vector<8x32xf32>
    %90 = arith.mulf %85, %89 : vector<8x32xf32>
    %c24_34 = arith.constant 24 : index
    %c0_35 = arith.constant 0 : index
    %91 = vector.load %arg9[%c24_34, %c0_35] : memref<64x32xf32, #tpu.memory_space<vmem>>, vector<8x32xf32>
    tpu.vector_store %arg9[%c24_34, %c0_35], %90 {strides = array<i32>} : memref<64x32xf32, #tpu.memory_space<vmem>>, vector<8x32xf32>,
    %c32 = arith.constant 32 : index
    %c0_36 = arith.constant 0 : index
    %92 = vector.load %arg8[%c32, %c0_36] : memref<64x128xf32, #tpu.memory_space<vmem>>, vector<8x128xf32>
    %cst_37 = arith.constant dense<0.000000e+00> : vector<8x128xf32>
    %93 = tpu.matmul %90, %7, %cst_37 {dimension_numbers = #tpu.dot_dimension_numbers<[1], [0], [0], [1], [0, 0, 1, 1], [], []>} : vector<8x32xf32>, vector<32x128xf32>, vector<8x128xf32> -> vector<8x128xf32>
    %94 = arith.addf %92, %93 : vector<8x128xf32>
    %95 = math.tanh %94 : vector<8x128xf32>
    %cst_38 = arith.constant 5.000000e-01 : f32
    %96 = vector.broadcast %cst_38 : f32 to vector<8x128xf32>
    %97 = arith.mulf %96, %95 : vector<8x128xf32>
    %cst_39 = arith.constant 5.000000e-01 : f32
    %98 = vector.broadcast %cst_39 : f32 to vector<8x128xf32>
    %99 = arith.addf %97, %98 : vector<8x128xf32>
    %100 = arith.select %13, %95, %99 : vector<8x128xi1>, vector<8x128xf32>
    %101 = vector.extract_strided_slice %100 {offsets = [0, 0], sizes = [8, 32], strides = [1, 1]} : vector<8x128xf32> to vector<8x32xf32>
    %102 = vector.extract_strided_slice %100 {offsets = [0, 32], sizes = [8, 32], strides = [1, 1]} : vector<8x128xf32> to vector<8x32xf32>
    %103 = vector.extract_strided_slice %100 {offsets = [0, 64], sizes = [8, 32], strides = [1, 1]} : vector<8x128xf32> to vector<8x32xf32>
    %104 = vector.extract_strided_slice %100 {offsets = [0, 96], sizes = [8, 32], strides = [1, 1]} : vector<8x128xf32> to vector<8x32xf32>
    %105 = arith.mulf %102, %88 : vector<8x32xf32>
    %106 = arith.mulf %101, %103 : vector<8x32xf32>
    %107 = arith.addf %105, %106 : vector<8x32xf32>
    %108 = math.tanh %107 : vector<8x32xf32>
    %109 = arith.mulf %104, %108 : vector<8x32xf32>
    %c32_40 = arith.constant 32 : index
    %c0_41 = arith.constant 0 : index
    %110 = vector.load %arg9[%c32_40, %c0_41] : memref<64x32xf32, #tpu.memory_space<vmem>>, vector<8x32xf32>
    tpu.vector_store %arg9[%c32_40, %c0_41], %109 {strides = array<i32>} : memref<64x32xf32, #tpu.memory_space<vmem>>, vector<8x32xf32>,
    %c40 = arith.constant 40 : index
    %c0_42 = arith.constant 0 : index
    %111 = vector.load %arg8[%c40, %c0_42] : memref<64x128xf32, #tpu.memory_space<vmem>>, vector<8x128xf32>
    %cst_43 = arith.constant dense<0.000000e+00> : vector<8x128xf32>
    %112 = tpu.matmul %109, %7, %cst_43 {dimension_numbers = #tpu.dot_dimension_numbers<[1], [0], [0], [1], [0, 0, 1, 1], [], []>} : vector<8x32xf32>, vector<32x128xf32>, vector<8x128xf32> -> vector<8x128xf32>
    %113 = arith.addf %111, %112 : vector<8x128xf32>
    %114 = math.tanh %113 : vector<8x128xf32>
    %cst_44 = arith.constant 5.000000e-01 : f32
    %115 = vector.broadcast %cst_44 : f32 to vector<8x128xf32>
    %116 = arith.mulf %115, %114 : vector<8x128xf32>
    %cst_45 = arith.constant 5.000000e-01 : f32
    %117 = vector.broadcast %cst_45 : f32 to vector<8x128xf32>
    %118 = arith.addf %116, %117 : vector<8x128xf32>
    %119 = arith.select %13, %114, %118 : vector<8x128xi1>, vector<8x128xf32>
    %120 = vector.extract_strided_slice %119 {offsets = [0, 0], sizes = [8, 32], strides = [1, 1]} : vector<8x128xf32> to vector<8x32xf32>
    %121 = vector.extract_strided_slice %119 {offsets = [0, 32], sizes = [8, 32], strides = [1, 1]} : vector<8x128xf32> to vector<8x32xf32>
    %122 = vector.extract_strided_slice %119 {offsets = [0, 64], sizes = [8, 32], strides = [1, 1]} : vector<8x128xf32> to vector<8x32xf32>
    %123 = vector.extract_strided_slice %119 {offsets = [0, 96], sizes = [8, 32], strides = [1, 1]} : vector<8x128xf32> to vector<8x32xf32>
    %124 = arith.mulf %121, %107 : vector<8x32xf32>
    %125 = arith.mulf %120, %122 : vector<8x32xf32>
    %126 = arith.addf %124, %125 : vector<8x32xf32>
    %127 = math.tanh %126 : vector<8x32xf32>
    %128 = arith.mulf %123, %127 : vector<8x32xf32>
    %c40_46 = arith.constant 40 : index
    %c0_47 = arith.constant 0 : index
    %129 = vector.load %arg9[%c40_46, %c0_47] : memref<64x32xf32, #tpu.memory_space<vmem>>, vector<8x32xf32>
    tpu.vector_store %arg9[%c40_46, %c0_47], %128 {strides = array<i32>} : memref<64x32xf32, #tpu.memory_space<vmem>>, vector<8x32xf32>,
    %c48 = arith.constant 48 : index
    %c0_48 = arith.constant 0 : index
    %130 = vector.load %arg8[%c48, %c0_48] : memref<64x128xf32, #tpu.memory_space<vmem>>, vector<8x128xf32>
    %cst_49 = arith.constant dense<0.000000e+00> : vector<8x128xf32>
    %131 = tpu.matmul %128, %7, %cst_49 {dimension_numbers = #tpu.dot_dimension_numbers<[1], [0], [0], [1], [0, 0, 1, 1], [], []>} : vector<8x32xf32>, vector<32x128xf32>, vector<8x128xf32> -> vector<8x128xf32>
    %132 = arith.addf %130, %131 : vector<8x128xf32>
    %133 = math.tanh %132 : vector<8x128xf32>
    %cst_50 = arith.constant 5.000000e-01 : f32
    %134 = vector.broadcast %cst_50 : f32 to vector<8x128xf32>
    %135 = arith.mulf %134, %133 : vector<8x128xf32>
    %cst_51 = arith.constant 5.000000e-01 : f32
    %136 = vector.broadcast %cst_51 : f32 to vector<8x128xf32>
    %137 = arith.addf %135, %136 : vector<8x128xf32>
    %138 = arith.select %13, %133, %137 : vector<8x128xi1>, vector<8x128xf32>
    %139 = vector.extract_strided_slice %138 {offsets = [0, 0], sizes = [8, 32], strides = [1, 1]} : vector<8x128xf32> to vector<8x32xf32>
    %140 = vector.extract_strided_slice %138 {offsets = [0, 32], sizes = [8, 32], strides = [1, 1]} : vector<8x128xf32> to vector<8x32xf32>
    %141 = vector.extract_strided_slice %138 {offsets = [0, 64], sizes = [8, 32], strides = [1, 1]} : vector<8x128xf32> to vector<8x32xf32>
    %142 = vector.extract_strided_slice %138 {offsets = [0, 96], sizes = [8, 32], strides = [1, 1]} : vector<8x128xf32> to vector<8x32xf32>
    %143 = arith.mulf %140, %126 : vector<8x32xf32>
    %144 = arith.mulf %139, %141 : vector<8x32xf32>
    %145 = arith.addf %143, %144 : vector<8x32xf32>
    %146 = math.tanh %145 : vector<8x32xf32>
    %147 = arith.mulf %142, %146 : vector<8x32xf32>
    %c48_52 = arith.constant 48 : index
    %c0_53 = arith.constant 0 : index
    %148 = vector.load %arg9[%c48_52, %c0_53] : memref<64x32xf32, #tpu.memory_space<vmem>>, vector<8x32xf32>
    tpu.vector_store %arg9[%c48_52, %c0_53], %147 {strides = array<i32>} : memref<64x32xf32, #tpu.memory_space<vmem>>, vector<8x32xf32>,
    %c56 = arith.constant 56 : index
    %c0_54 = arith.constant 0 : index
    %149 = vector.load %arg8[%c56, %c0_54] : memref<64x128xf32, #tpu.memory_space<vmem>>, vector<8x128xf32>
    %cst_55 = arith.constant dense<0.000000e+00> : vector<8x128xf32>
    %150 = tpu.matmul %147, %7, %cst_55 {dimension_numbers = #tpu.dot_dimension_numbers<[1], [0], [0], [1], [0, 0, 1, 1], [], []>} : vector<8x32xf32>, vector<32x128xf32>, vector<8x128xf32> -> vector<8x128xf32>
    %151 = arith.addf %149, %150 : vector<8x128xf32>
    %152 = math.tanh %151 : vector<8x128xf32>
    %cst_56 = arith.constant 5.000000e-01 : f32
    %153 = vector.broadcast %cst_56 : f32 to vector<8x128xf32>
    %154 = arith.mulf %153, %152 : vector<8x128xf32>
    %cst_57 = arith.constant 5.000000e-01 : f32
    %155 = vector.broadcast %cst_57 : f32 to vector<8x128xf32>
    %156 = arith.addf %154, %155 : vector<8x128xf32>
    %157 = arith.select %13, %152, %156 : vector<8x128xi1>, vector<8x128xf32>
    %158 = vector.extract_strided_slice %157 {offsets = [0, 0], sizes = [8, 32], strides = [1, 1]} : vector<8x128xf32> to vector<8x32xf32>
    %159 = vector.extract_strided_slice %157 {offsets = [0, 32], sizes = [8, 32], strides = [1, 1]} : vector<8x128xf32> to vector<8x32xf32>
    %160 = vector.extract_strided_slice %157 {offsets = [0, 64], sizes = [8, 32], strides = [1, 1]} : vector<8x128xf32> to vector<8x32xf32>
    %161 = vector.extract_strided_slice %157 {offsets = [0, 96], sizes = [8, 32], strides = [1, 1]} : vector<8x128xf32> to vector<8x32xf32>
    %162 = arith.mulf %159, %145 : vector<8x32xf32>
    %163 = arith.mulf %158, %160 : vector<8x32xf32>
    %164 = arith.addf %162, %163 : vector<8x32xf32>
    %165 = math.tanh %164 : vector<8x32xf32>
    %166 = arith.mulf %161, %165 : vector<8x32xf32>
    %c56_58 = arith.constant 56 : index
    %c0_59 = arith.constant 0 : index
    %167 = vector.load %arg9[%c56_58, %c0_59] : memref<64x32xf32, #tpu.memory_space<vmem>>, vector<8x32xf32>
    tpu.vector_store %arg9[%c56_58, %c0_59], %166 {strides = array<i32>} : memref<64x32xf32, #tpu.memory_space<vmem>>, vector<8x32xf32>,
    %c0_60 = arith.constant 0 : index
    %c0_61 = arith.constant 0 : index
    %168 = vector.load %arg9[%c0_60, %c0_61] : memref<64x32xf32, #tpu.memory_space<vmem>>, vector<64x32xf32>
    %c0_62 = arith.constant 0 : index
    %c0_63 = arith.constant 0 : index
    %169 = vector.load %arg5[%c0_62, %c0_63] : memref<32x128xf32, #tpu.memory_space<vmem>>, vector<32x128xf32>
    %cst_64 = arith.constant dense<0.000000e+00> : vector<64x128xf32>
    %170 = tpu.matmul %168, %169, %cst_64 {dimension_numbers = #tpu.dot_dimension_numbers<[1], [0], [0], [1], [0, 0, 1, 1], [], []>} : vector<64x32xf32>, vector<32x128xf32>, vector<64x128xf32> -> vector<64x128xf32>
    %c0_65 = arith.constant 0 : index
    %c0_66 = arith.constant 0 : index
    %171 = vector.load %arg6[%c0_65, %c0_66] : memref<1x128xf32, #tpu.memory_space<vmem>>, vector<1x128xf32>
    %172 = vector.broadcast %171 : vector<1x128xf32> to vector<64x128xf32>
    %173 = arith.addf %170, %172 : vector<64x128xf32>
    %c0_67 = arith.constant 0 : index
    %c0_68 = arith.constant 0 : index
    %174 = vector.load %arg7[%c0_67, %c0_68] : memref<64x128xf32, #tpu.memory_space<vmem>>, vector<64x128xf32>
    tpu.vector_store %arg7[%c0_67, %c0_68], %173 {strides = array<i32>} : memref<64x128xf32, #tpu.memory_space<vmem>>, vector<64x128xf32>,
    return
  }
  func.func @transform_0(%arg0: i32) -> (i32, i32) {
    %c0_i32 = arith.constant 0 : i32
    %c0_i32_0 = arith.constant 0 : i32
    %c0_i32_1 = arith.constant 0 : i32
    return %c0_i32, %c0_i32_0 : i32, i32
  }
  func.func @transform_1(%arg0: i32) -> (i32, i32) {
    %c0_i32 = arith.constant 0 : i32
    %c0_i32_0 = arith.constant 0 : i32
    %c0_i32_1 = arith.constant 0 : i32
    return %c0_i32, %c0_i32_0 : i32, i32
  }
  func.func @transform_2(%arg0: i32) -> (i32, i32) {
    %c0_i32 = arith.constant 0 : i32
    %c0_i32_0 = arith.constant 0 : i32
    %c0_i32_1 = arith.constant 0 : i32
    return %c0_i32, %c0_i32_0 : i32, i32
  }
  func.func @transform_3(%arg0: i32) -> (i32, i32) {
    %c0_i32 = arith.constant 0 : i32
    %c0_i32_0 = arith.constant 0 : i32
    %c0_i32_1 = arith.constant 0 : i32
    return %c0_i32, %c0_i32_0 : i32, i32
  }
  func.func @transform_4(%arg0: i32) -> (i32, i32) {
    %c0_i32 = arith.constant 0 : i32
    %c0_i32_0 = arith.constant 0 : i32
    %c0_i32_1 = arith.constant 0 : i32
    return %c0_i32, %c0_i32_0 : i32, i32
  }
  func.func @transform_5(%arg0: i32) -> (i32, i32) {
    %c0_i32 = arith.constant 0 : i32
    %c0_i32_0 = arith.constant 0 : i32
    %c0_i32_1 = arith.constant 0 : i32
    return %c0_i32, %c0_i32_0 : i32, i32
  }
  func.func @transform_6(%arg0: i32) -> (i32, i32) {
    %c0_i32 = arith.constant 0 : i32
    %c0_i32_0 = arith.constant 0 : i32
    %c0_i32_1 = arith.constant 0 : i32
    return %c0_i32, %c0_i32_0 : i32, i32
  }
}

</mosaic_0001>

<llo_original>
// kernel: decoder_forward.1
$region0: #{decoder_forward.1}
  #allocation0 [shape = 'u32[]', space=smem, size = 0x4, offset = 0x4, fixed_abs, tag = 'smem constant byte address 0x4 - core index']
  #allocation1 [shape = 'u32[144,128]{1,0:T(1,128)}', space=vmem, size = 0x12000, scoped, tag = 'internal scratch']
  #allocation2 [shape = 'f32[64,128]{1,0:T(8,128)}', space=vmem, size = 0x8000, scoped, tag = 'scratch operand']
  #allocation3 [shape = 'f32[64,32]{1,0:T(8,128)}', space=vmem, size = 0x8000, scoped, tag = 'scratch operand']
  %s0 = inlined_call_operand.vmem [shape: f32[64,32], index: 0, kind: input, shape index: {}]
  %s1 = inlined_call_operand.vmem [shape: f32[32,128], index: 1, kind: input, shape index: {}]
  %s2 = inlined_call_operand.vmem [shape: f32[32,128], index: 2, kind: input, shape index: {}]
  %s3 = inlined_call_operand.vmem [shape: f32[1,128], index: 3, kind: input, shape index: {}]
  %s4 = inlined_call_operand.vmem [shape: f32[32,128], index: 4, kind: input, shape index: {}]
  %s5 = inlined_call_operand.vmem [shape: f32[1,128], index: 5, kind: input, shape index: {}]
  %s6 = inlined_call_operand.vmem [shape: f32[64,128], index: 6, kind: output, shape index: {}]
  %s7 = sld [smem:[#allocation0]]
  $region34: #{decoder_forward.1} parent=0
    _
  %s9 = ssub.s32 1, %s7
  %s10 = scalar_select 0, %s9, %s7
  // Predicated region
  $region2: #{decoder_forward.1} parent=0 // pred_check
    _
  $region3: #{decoder_forward.1} parent=0 // pred_check_branch
    %12 = sbr.rel (0) target = $region5
  $region4: #{decoder_forward.1} parent=0 // pred_region
    _
  $region5: #{decoder_forward.1} parent=0 // pred_fallthru
    _
  // Predicated region
  $region6: #{decoder_forward.1} parent=0 // pred_check
    _
  $region7: #{decoder_forward.1} parent=0 // pred_check_branch
    %14 = sbr.rel (0) target = $region9
  $region8: #{decoder_forward.1} parent=0 // pred_region
    _
  $region9: #{decoder_forward.1} parent=0 // pred_fallthru
    _
  // Predicated region
  $region10: #{decoder_forward.1} parent=0 // pred_check
    _
  $region11: #{decoder_forward.1} parent=0 // pred_check_branch
    %16 = sbr.rel (0) target = $region13
  $region12: #{decoder_forward.1} parent=0 // pred_region
    _
  $region13: #{decoder_forward.1} parent=0 // pred_fallthru
    _
  // Predicated region
  $region14: #{decoder_forward.1} parent=0 // pred_check
    _
  $region15: #{decoder_forward.1} parent=0 // pred_check_branch
    %18 = sbr.rel (0) target = $region17
  $region16: #{decoder_forward.1} parent=0 // pred_region
    _
  $region17: #{decoder_forward.1} parent=0 // pred_fallthru
    _
  // Predicated region
  $region18: #{decoder_forward.1} parent=0 // pred_check
    _
  $region19: #{decoder_forward.1} parent=0 // pred_check_branch
    %20 = sbr.rel (0) target = $region21
  $region20: #{decoder_forward.1} parent=0 // pred_region
    _
  $region21: #{decoder_forward.1} parent=0 // pred_fallthru
    _
  // Predicated region
  $region22: #{decoder_forward.1} parent=0 // pred_check
    _
  $region23: #{decoder_forward.1} parent=0 // pred_check_branch
    %22 = sbr.rel (0) target = $region25
  $region24: #{decoder_forward.1} parent=0 // pred_region
    _
  $region25: #{decoder_forward.1} parent=0 // pred_fallthru
    _
  %v23 = vld [vmem:[%s0] sm:$0xff]
  %v24 = vld [vmem:[%s0 + $0x8] sm:$0xff]
  %v25 = vld [vmem:[%s0 + $0x10] sm:$0xff]
  %v26 = vld [vmem:[%s0 + $0x18] sm:$0xff]
  %v27 = vld [vmem:[%s0 + $0x20] sm:$0xff]
  %v28 = vld [vmem:[%s0 + $0x28] sm:$0xff]
  %v29 = vld [vmem:[%s0 + $0x30] sm:$0xff]
  %v30 = vld [vmem:[%s0 + $0x38] sm:$0xff]
  %v31 = vld [vmem:[%s1] sm:$0xff]
  %v32 = vld [vmem:[%s1 + $0x8] sm:$0xff]
  %v33 = vld [vmem:[%s1 + $0x10] sm:$0xff]
  %v34 = vld [vmem:[%s1 + $0x18] sm:$0xff]
  %v35 = vld [vmem:[%s3] sm:$0x1]
  %v37 = vlaneseq
  %v38 = vshrl.u32 %v37, 7
  %v39 = vsub.s32 0, %v38
  %v40 = vrot.slane %v35, %v39
  %vm42 = vcmask 261120
  %v44 = vsel %vm42, %v23, 0
  %v47 = vsel %vm42, %v24, 0
  %v50 = vsel %vm42, %v25, 0
  %v53 = vsel %vm42, %v26, 0
  %v56 = vsel %vm42, %v27, 0
  %v59 = vsel %vm42, %v28, 0
  %v62 = vsel %vm42, %v29, 0
  %v65 = vsel %vm42, %v30, 0
  %67 = vmatprep.subr.mxu0 0.0
  %68 = vmatpush1.msra.mxu0 %v31
  %69 = vmatprep.subr.mxu0 0.0
  %70 = vmatpush1.msra.mxu0 %v32
  %71 = vmatprep.subr.mxu0 0.0
  %72 = vmatpush1.msra.mxu0 %v33
  %73 = vmatprep.subr.mxu0 0.0
  %74 = vmatpush1.msra.mxu0 %v34
  %75 = vmatprep.subr.mxu0 0.0
  %76 = vmatpush1.msra.mxu0 0.0
  %77 = vmatprep.subr.mxu0 0.0
  %78 = vmatpush1.msra.mxu0 0.0
  %79 = vmatprep.subr.mxu0 0.0
  %80 = vmatpush1.msra.mxu0 0.0
  %81 = vmatprep.subr.mxu0 0.0
  %82 = vmatpush1.msra.mxu0 0.0
  %83 = vmatprep.subr.mxu0 0.0
  %84 = vmatpush1.msra.mxu0 0.0
  %85 = vmatprep.subr.mxu0 0.0
  %86 = vmatpush1.msra.mxu0 0.0
  %87 = vmatprep.subr.mxu0 0.0
  %88 = vmatpush1.msra.mxu0 0.0
  %89 = vmatprep.subr.mxu0 0.0
  %90 = vmatpush1.msra.mxu0 0.0
  %91 = vmatprep.subr.mxu0 0.0
  %92 = vmatpush1.msra.mxu0 0.0
  %93 = vmatprep.subr.mxu0 0.0
  %94 = vmatpush1.msra.mxu0 0.0
  %95 = vmatprep.subr.mxu0 0.0
  %96 = vmatpush1.msra.mxu0 0.0
  %97 = vmatprep.subr.mxu0 0.0
  %98 = vmatpush1.msra.mxu0 0.0
  %99 = vmatprep.subr.mxu0 0.0
  %100 = vmatpush1.msra.mxu0 0.0
  %101 = vmatprep.subr.mxu0 0.0
  %102 = vmatpush1.msra.mxu0 0.0
  %103 = vmatprep.subr.mxu0 0.0
  %104 = vmatpush1.msra.mxu0 0.0
  %105 = vmatprep.subr.mxu0 0.0
  %106 = vmatpush1.msra.mxu0 0.0
  %107 = vmatprep.subr.mxu0 0.0
  %108 = vmatpush1.msra.mxu0 0.0
  %109 = vmatprep.subr.mxu0 0.0
  %110 = vmatpush1.msra.mxu0 0.0
  %111 = vmatprep.subr.mxu0 0.0
  %112 = vmatpush1.msra.mxu0 0.0
  %113 = vmatprep.subr.mxu0 0.0
  %114 = vmatpush1.msra.mxu0 0.0
  %115 = vmatprep.subr.mxu0 0.0
  %116 = vmatpush1.msra.mxu0 0.0
  %117 = vmatprep.subr.mxu0 0.0
  %118 = vmatpush1.msra.mxu0 0.0
  %119 = vmatprep.subr.mxu0 0.0
  %120 = vmatpush1.msra.mxu0 0.0
  %121 = vmatprep.subr.mxu0 0.0
  %122 = vmatpush1.msra.mxu0 0.0
  %123 = vmatprep.subr.mxu0 0.0
  %124 = vmatpush1.msra.mxu0 0.0
  %125 = vmatprep.subr.mxu0 0.0
  %126 = vmatpush1.msra.mxu0 0.0
  %127 = vmatprep.subr.mxu0 0.0
  %128 = vmatpush1.msra.mxu0 0.0
  %129 = vmatprep.subr.mxu0 0.0
  %130 = vmatpush1.msra.mxu0 0.0
  %131 = vmatprep.mubr.f32.mxu0 0.0
  %132 = vmatmul.mubr.f32.gmra.mrb[0].mxu0 %v44
  %v133 = vpop.f32.mrb[0].mxu0
  %v134 = vadd.f32 %v40, %v133
  %v135 = vpop.f32.mrb[0].mxu0
  %136 = vmatprep.mubr.f32.mxu0 0.0
  %137 = vmatmul.mubr.f32.gmra.mrb[0].mxu0 %v47
  %v138 = vpop.f32.mrb[0].mxu0
  %v139 = vadd.f32 %v40, %v138
  %v140 = vpop.f32.mrb[0].mxu0
  %141 = vmatprep.mubr.f32.mxu0 0.0
  %142 = vmatmul.mubr.f32.gmra.mrb[0].mxu0 %v50
  %v143 = vpop.f32.mrb[0].mxu0
  %v144 = vadd.f32 %v40, %v143
  %v145 = vpop.f32.mrb[0].mxu0
  %146 = vmatprep.mubr.f32.mxu0 0.0
  %147 = vmatmul.mubr.f32.gmra.mrb[0].mxu0 %v53
  %v148 = vpop.f32.mrb[0].mxu0
  %v149 = vadd.f32 %v40, %v148
  %v150 = vpop.f32.mrb[0].mxu0
  %151 = vmatprep.mubr.f32.mxu0 0.0
  %152 = vmatmul.mubr.f32.gmra.mrb[0].mxu0 %v56
  %v153 = vpop.f32.mrb[0].mxu0
  %v154 = vadd.f32 %v40, %v153
  %v155 = vpop.f32.mrb[0].mxu0
  %156 = vmatprep.mubr.f32.mxu0 0.0
  %157 = vmatmul.mubr.f32.gmra.mrb[0].mxu0 %v59
  %v158 = vpop.f32.mrb[0].mxu0
  %v159 = vadd.f32 %v40, %v158
  %v160 = vpop.f32.mrb[0].mxu0
  %161 = vmatprep.mubr.f32.mxu0 0.0
  %162 = vmatmul.mubr.f32.gmra.mrb[0].mxu0 %v62
  %v163 = vpop.f32.mrb[0].mxu0
  %v164 = vadd.f32 %v40, %v163
  %v165 = vpop.f32.mrb[0].mxu0
  %166 = vmatprep.mubr.f32.mxu0 0.0
  %167 = vmatmul.mubr.f32.gmra.mrb[0].mxu0 %v65
  %v168 = vpop.f32.mrb[0].mxu0
  %v169 = vadd.f32 %v40, %v168
  %v170 = vpop.f32.mrb[0].mxu0
  %171 = vdwg.mxu0
  %172 = vst [vmem:[#allocation2] sm:$0xff] %v134
  %173 = vst [vmem:[#allocation2 + $0x8] sm:$0xff] %v139
  %174 = vst [vmem:[#allocation2 + $0x10] sm:$0xff] %v144
  %175 = vst [vmem:[#allocation2 + $0x18] sm:$0xff] %v149
  %176 = vst [vmem:[#allocation2 + $0x20] sm:$0xff] %v154
  %177 = vst [vmem:[#allocation2 + $0x28] sm:$0xff] %v159
  %178 = vst [vmem:[#allocation2 + $0x30] sm:$0xff] %v164
  %179 = vst [vmem:[#allocation2 + $0x38] sm:$0xff] %v169
  %v180 = vld [vmem:[%s2] sm:$0xff]
  %v181 = vld [vmem:[%s2 + $0x8] sm:$0xff]
  %v182 = vld [vmem:[%s2 + $0x10] sm:$0xff]
  %v183 = vld [vmem:[%s2 + $0x18] sm:$0xff]
  %v184 = vlaneseq
  %v185 = vand.u32 %v184, 127
  %vm186 = vcmp.ge.s32.totalorder %v185, 64
  %vm187 = vcmp.lt.s32.totalorder %v185, 96
  %vm188 = vmand %vm186, %vm187
  %v189 = vld [vmem:[#allocation2] sm:$0xff]
  %v191 = vsel %vm42, 0.0, 0
  %193 = vmatprep.subr.mxu0 0.0
  %194 = vmatpush1.msra.mxu0 %v180
  %195 = vmatprep.subr.mxu0 0.0
  %196 = vmatpush1.msra.mxu0 %v181
  %197 = vmatprep.subr.mxu0 0.0
  %198 = vmatpush1.msra.mxu0 %v182
  %199 = vmatprep.subr.mxu0 0.0
  %200 = vmatpush1.msra.mxu0 %v183
  %201 = vmatprep.subr.mxu0 0.0
  %202 = vmatpush1.msra.mxu0 0.0
  %203 = vmatprep.subr.mxu0 0.0
  %204 = vmatpush1.msra.mxu0 0.0
  %205 = vmatprep.subr.mxu0 0.0
  %206 = vmatpush1.msra.mxu0 0.0
  %207 = vmatprep.subr.mxu0 0.0
  %208 = vmatpush1.msra.mxu0 0.0
  %209 = vmatprep.subr.mxu0 0.0
  %210 = vmatpush1.msra.mxu0 0.0
  %211 = vmatprep.subr.mxu0 0.0
  %212 = vmatpush1.msra.mxu0 0.0
  %213 = vmatprep.subr.mxu0 0.0
  %214 = vmatpush1.msra.mxu0 0.0
  %215 = vmatprep.subr.mxu0 0.0
  %216 = vmatpush1.msra.mxu0 0.0
  %217 = vmatprep.subr.mxu0 0.0
  %218 = vmatpush1.msra.mxu0 0.0
  %219 = vmatprep.subr.mxu0 0.0
  %220 = vmatpush1.msra.mxu0 0.0
  %221 = vmatprep.subr.mxu0 0.0
  %222 = vmatpush1.msra.mxu0 0.0
  %223 = vmatprep.subr.mxu0 0.0
  %224 = vmatpush1.msra.mxu0 0.0
  %225 = vmatprep.subr.mxu0 0.0
  %226 = vmatpush1.msra.mxu0 0.0
  %227 = vmatprep.subr.mxu0 0.0
  %228 = vmatpush1.msra.mxu0 0.0
  %229 = vmatprep.subr.mxu0 0.0
  %230 = vmatpush1.msra.mxu0 0.0
  %231 = vmatprep.subr.mxu0 0.0
  %232 = vmatpush1.msra.mxu0 0.0
  %233 = vmatprep.subr.mxu0 0.0
  %234 = vmatpush1.msra.mxu0 0.0
  %235 = vmatprep.subr.mxu0 0.0
  %236 = vmatpush1.msra.mxu0 0.0
  %237 = vmatprep.subr.mxu0 0.0
  %238 = vmatpush1.msra.mxu0 0.0
  %239 = vmatprep.subr.mxu0 0.0
  %240 = vmatpush1.msra.mxu0 0.0
  %241 = vmatprep.subr.mxu0 0.0
  %242 = vmatpush1.msra.mxu0 0.0
  %243 = vmatprep.subr.mxu0 0.0
  %244 = vmatpush1.msra.mxu0 0.0
  %245 = vmatprep.subr.mxu0 0.0
  %246 = vmatpush1.msra.mxu0 0.0
  %247 = vmatprep.subr.mxu0 0.0
  %248 = vmatpush1.msra.mxu0 0.0
  %249 = vmatprep.subr.mxu0 0.0
  %250 = vmatpush1.msra.mxu0 0.0
  %251 = vmatprep.subr.mxu0 0.0
  %252 = vmatpush1.msra.mxu0 0.0
  %253 = vmatprep.subr.mxu0 0.0
  %254 = vmatpush1.msra.mxu0 0.0
  %255 = vmatprep.subr.mxu0 0.0
  %256 = vmatpush1.msra.mxu0 0.0
  %257 = vmatprep.mubr.f32.mxu0 0.0
  %258 = vmatmul.mubr.f32.gmra.mrb[0].mxu0 %v191
  %v259 = vpop.f32.mrb[0].mxu0
  %v260 = vadd.f32 0.0, %v259
  %v261 = vpop.f32.mrb[0].mxu0
  %262 = vdwg.mxu0
  %v263 = vadd.f32 %v189, %v260
  %v264 = vtanh.pop %v263
  %v265 = vmul.f32 %v264, 0.5
  %v266 = vadd.f32 %v265, 0.5
  %v267 = vsel %vm188, %v264, %v266
  %v268 = vmul.f32 %v267, 0.0
  %270 = vrot.lane.b32.xlu0 %v267, 64
  %v271 = vpop.permute.xlu0 %270
  %v273 = vmul.f32 %v267, %v271
  %275 = vrot.lane.b32.xlu0 %v273, 32
  %v276 = vpop.permute.xlu0 %275
  %v278 = vadd.f32 %v268, %v276
  %v279 = vtanh.pop %v278
  %281 = vrot.lane.b32.xlu0 %v279, 64
  %v282 = vpop.permute.xlu0 %281
  %v284 = vmul.f32 %v267, %v282
  %286 = vrot.lane.b32.xlu0 %v284, 32
  %v287 = vpop.permute.xlu0 %286
  %289 = vst.msk [vmem:[#allocation3] sm:$0xff] %vm42, %v287
  %v290 = vld [vmem:[#allocation2 + $0x8] sm:$0xff]
  %v291 = vsel %vm42, %v287, 0
  %293 = vmatprep.subr.mxu0 0.0
  %294 = vmatpush1.msra.mxu0 %v180
  %295 = vmatprep.subr.mxu0 0.0
  %296 = vmatpush1.msra.mxu0 %v181
  %297 = vmatprep.subr.mxu0 0.0
  %298 = vmatpush1.msra.mxu0 %v182
  %299 = vmatprep.subr.mxu0 0.0
  %300 = vmatpush1.msra.mxu0 %v183
  %301 = vmatprep.subr.mxu0 0.0
  %302 = vmatpush1.msra.mxu0 0.0
  %303 = vmatprep.subr.mxu0 0.0
  %304 = vmatpush1.msra.mxu0 0.0
  %305 = vmatprep.subr.mxu0 0.0
  %306 = vmatpush1.msra.mxu0 0.0
  %307 = vmatprep.subr.mxu0 0.0
  %308 = vmatpush1.msra.mxu0 0.0
  %309 = vmatprep.subr.mxu0 0.0
  %310 = vmatpush1.msra.mxu0 0.0
  %311 = vmatprep.subr.mxu0 0.0
  %312 = vmatpush1.msra.mxu0 0.0
  %313 = vmatprep.subr.mxu0 0.0
  %314 = vmatpush1.msra.mxu0 0.0
  %315 = vmatprep.subr.mxu0 0.0
  %316 = vmatpush1.msra.mxu0 0.0
  %317 = vmatprep.subr.mxu0 0.0
  %318 = vmatpush1.msra.mxu0 0.0
  %319 = vmatprep.subr.mxu0 0.0
  %320 = vmatpush1.msra.mxu0 0.0
  %321 = vmatprep.subr.mxu0 0.0
  %322 = vmatpush1.msra.mxu0 0.0
  %323 = vmatprep.subr.mxu0 0.0
  %324 = vmatpush1.msra.mxu0 0.0
  %325 = vmatprep.subr.mxu0 0.0
  %326 = vmatpush1.msra.mxu0 0.0
  %327 = vmatprep.subr.mxu0 0.0
  %328 = vmatpush1.msra.mxu0 0.0
  %329 = vmatprep.subr.mxu0 0.0
  %330 = vmatpush1.msra.mxu0 0.0
  %331 = vmatprep.subr.mxu0 0.0
  %332 = vmatpush1.msra.mxu0 0.0
  %333 = vmatprep.subr.mxu0 0.0
  %334 = vmatpush1.msra.mxu0 0.0
  %335 = vmatprep.subr.mxu0 0.0
  %336 = vmatpush1.msra.mxu0 0.0
  %337 = vmatprep.subr.mxu0 0.0
  %338 = vmatpush1.msra.mxu0 0.0
  %339 = vmatprep.subr.mxu0 0.0
  %340 = vmatpush1.msra.mxu0 0.0
  %341 = vmatprep.subr.mxu0 0.0
  %342 = vmatpush1.msra.mxu0 0.0
  %343 = vmatprep.subr.mxu0 0.0
  %344 = vmatpush1.msra.mxu0 0.0
  %345 = vmatprep.subr.mxu0 0.0
  %346 = vmatpush1.msra.mxu0 0.0
  %347 = vmatprep.subr.mxu0 0.0
  %348 = vmatpush1.msra.mxu0 0.0
  %349 = vmatprep.subr.mxu0 0.0
  %350 = vmatpush1.msra.mxu0 0.0
  %351 = vmatprep.subr.mxu0 0.0
  %352 = vmatpush1.msra.mxu0 0.0
  %353 = vmatprep.subr.mxu0 0.0
  %354 = vmatpush1.msra.mxu0 0.0
  %355 = vmatprep.subr.mxu0 0.0
  %356 = vmatpush1.msra.mxu0 0.0
  %357 = vmatprep.mubr.f32.mxu0 0.0
  %358 = vmatmul.mubr.f32.gmra.mrb[0].mxu0 %v291
  %v359 = vpop.f32.mrb[0].mxu0
  %v360 = vadd.f32 0.0, %v359
  %v361 = vpop.f32.mrb[0].mxu0
  %362 = vdwg.mxu0
  %v363 = vadd.f32 %v290, %v360
  %v364 = vtanh.pop %v363
  %v365 = vmul.f32 %v364, 0.5
  %v366 = vadd.f32 %v365, 0.5
  %v367 = vsel %vm188, %v364, %v366
  %v368 = vmul.f32 %v367, %v278
  %370 = vrot.lane.b32.xlu0 %v367, 64
  %v371 = vpop.permute.xlu0 %370
  %v373 = vmul.f32 %v367, %v371
  %375 = vrot.lane.b32.xlu0 %v373, 32
  %v376 = vpop.permute.xlu0 %375
  %v378 = vadd.f32 %v368, %v376
  %v379 = vtanh.pop %v378
  %381 = vrot.lane.b32.xlu0 %v379, 64
  %v382 = vpop.permute.xlu0 %381
  %v384 = vmul.f32 %v367, %v382
  %386 = vrot.lane.b32.xlu0 %v384, 32
  %v387 = vpop.permute.xlu0 %386
  %389 = vst.msk [vmem:[#allocation3 + $0x8] sm:$0xff] %vm42, %v387
  %v390 = vld [vmem:[#allocation2 + $0x10] sm:$0xff]
  %v391 = vsel %vm42, %v387, 0
  %393 = vmatprep.subr.mxu0 0.0
  %394 = vmatpush1.msra.mxu0 %v180
  %395 = vmatprep.subr.mxu0 0.0
  %396 = vmatpush1.msra.mxu0 %v181
  %397 = vmatprep.subr.mxu0 0.0
  %398 = vmatpush1.msra.mxu0 %v182
  %399 = vmatprep.subr.mxu0 0.0
  %400 = vmatpush1.msra.mxu0 %v183
  %401 = vmatprep.subr.mxu0 0.0
  %402 = vmatpush1.msra.mxu0 0.0
  %403 = vmatprep.subr.mxu0 0.0
  %404 = vmatpush1.msra.mxu0 0.0
  %405 = vmatprep.subr.mxu0 0.0
  %406 = vmatpush1.msra.mxu0 0.0
  %407 = vmatprep.subr.mxu0 0.0
  %408 = vmatpush1.msra.mxu0 0.0
  %409 = vmatprep.subr.mxu0 0.0
  %410 = vmatpush1.msra.mxu0 0.0
  %411 = vmatprep.subr.mxu0 0.0
  %412 = vmatpush1.msra.mxu0 0.0
  %413 = vmatprep.subr.mxu0 0.0
  %414 = vmatpush1.msra.mxu0 0.0
  %415 = vmatprep.subr.mxu0 0.0
  %416 = vmatpush1.msra.mxu0 0.0
  %417 = vmatprep.subr.mxu0 0.0
  %418 = vmatpush1.msra.mxu0 0.0
  %419 = vmatprep.subr.mxu0 0.0
  %420 = vmatpush1.msra.mxu0 0.0
  %421 = vmatprep.subr.mxu0 0.0
  %422 = vmatpush1.msra.mxu0 0.0
  %423 = vmatprep.subr.mxu0 0.0
  %424 = vmatpush1.msra.mxu0 0.0
  %425 = vmatprep.subr.mxu0 0.0
  %426 = vmatpush1.msra.mxu0 0.0
  %427 = vmatprep.subr.mxu0 0.0
  %428 = vmatpush1.msra.mxu0 0.0
  %429 = vmatprep.subr.mxu0 0.0
  %430 = vmatpush1.msra.mxu0 0.0
  %431 = vmatprep.subr.mxu0 0.0
  %432 = vmatpush1.msra.mxu0 0.0
  %433 = vmatprep.subr.mxu0 0.0
  %434 = vmatpush1.msra.mxu0 0.0
  %435 = vmatprep.subr.mxu0 0.0
  %436 = vmatpush1.msra.mxu0 0.0
  %437 = vmatprep.subr.mxu0 0.0
  %438 = vmatpush1.msra.mxu0 0.0
  %439 = vmatprep.subr.mxu0 0.0
  %440 = vmatpush1.msra.mxu0 0.0
  %441 = vmatprep.subr.mxu0 0.0
  %442 = vmatpush1.msra.mxu0 0.0
  %443 = vmatprep.subr.mxu0 0.0
  %444 = vmatpush1.msra.mxu0 0.0
  %445 = vmatprep.subr.mxu0 0.0
  %446 = vmatpush1.msra.mxu0 0.0
  %447 = vmatprep.subr.mxu0 0.0
  %448 = vmatpush1.msra.mxu0 0.0
  %449 = vmatprep.subr.mxu0 0.0
  %450 = vmatpush1.msra.mxu0 0.0
  %451 = vmatprep.subr.mxu0 0.0
  %452 = vmatpush1.msra.mxu0 0.0
  %453 = vmatprep.subr.mxu0 0.0
  %454 = vmatpush1.msra.mxu0 0.0
  %455 = vmatprep.subr.mxu0 0.0
  %456 = vmatpush1.msra.mxu0 0.0
  %457 = vmatprep.mubr.f32.mxu0 0.0
  %458 = vmatmul.mubr.f32.gmra.mrb[0].mxu0 %v391
  %v459 = vpop.f32.mrb[0].mxu0
  %v460 = vadd.f32 0.0, %v459
  %v461 = vpop.f32.mrb[0].mxu0
  %462 = vdwg.mxu0
  %v463 = vadd.f32 %v390, %v460
  %v464 = vtanh.pop %v463
  %v465 = vmul.f32 %v464, 0.5
  %v466 = vadd.f32 %v465, 0.5
  %v467 = vsel %vm188, %v464, %v466
  %v468 = vmul.f32 %v467, %v378
  %470 = vrot.lane.b32.xlu0 %v467, 64
  %v471 = vpop.permute.xlu0 %470
  %v473 = vmul.f32 %v467, %v471
  %475 = vrot.lane.b32.xlu0 %v473, 32
  %v476 = vpop.permute.xlu0 %475
  %v478 = vadd.f32 %v468, %v476
  %v479 = vtanh.pop %v478
  %481 = vrot.lane.b32.xlu0 %v479, 64
  %v482 = vpop.permute.xlu0 %481
  %v484 = vmul.f32 %v467, %v482
  %486 = vrot.lane.b32.xlu0 %v484, 32
  %v487 = vpop.permute.xlu0 %486
  %489 = vst.msk [vmem:[#allocation3 + $0x10] sm:$0xff] %vm42, %v487
  %v490 = vld [vmem:[#allocation2 + $0x18] sm:$0xff]
  %v491 = vsel %vm42, %v487, 0
  %493 = vmatprep.subr.mxu0 0.0
  %494 = vmatpush1.msra.mxu0 %v180
  %495 = vmatprep.subr.mxu0 0.0
  %496 = vmatpush1.msra.mxu0 %v181
  %497 = vmatprep.subr.mxu0 0.0
  %498 = vmatpush1.msra.mxu0 %v182
  %499 = vmatprep.subr.mxu0 0.0
  %500 = vmatpush1.msra.mxu0 %v183
  %501 = vmatprep.subr.mxu0 0.0
  %502 = vmatpush1.msra.mxu0 0.0
  %503 = vmatprep.subr.mxu0 0.0
  %504 = vmatpush1.msra.mxu0 0.0
  %505 = vmatprep.subr.mxu0 0.0
  %506 = vmatpush1.msra.mxu0 0.0
  %507 = vmatprep.subr.mxu0 0.0
  %508 = vmatpush1.msra.mxu0 0.0
  %509 = vmatprep.subr.mxu0 0.0
  %510 = vmatpush1.msra.mxu0 0.0
  %511 = vmatprep.subr.mxu0 0.0
  %512 = vmatpush1.msra.mxu0 0.0
  %513 = vmatprep.subr.mxu0 0.0
  %514 = vmatpush1.msra.mxu0 0.0
  %515 = vmatprep.subr.mxu0 0.0
  %516 = vmatpush1.msra.mxu0 0.0
  %517 = vmatprep.subr.mxu0 0.0
  %518 = vmatpush1.msra.mxu0 0.0
  %519 = vmatprep.subr.mxu0 0.0
  %520 = vmatpush1.msra.mxu0 0.0
  %521 = vmatprep.subr.mxu0 0.0
  %522 = vmatpush1.msra.mxu0 0.0
  %523 = vmatprep.subr.mxu0 0.0
  %524 = vmatpush1.msra.mxu0 0.0
  %525 = vmatprep.subr.mxu0 0.0
  %526 = vmatpush1.msra.mxu0 0.0
  %527 = vmatprep.subr.mxu0 0.0
  %528 = vmatpush1.msra.mxu0 0.0
  %529 = vmatprep.subr.mxu0 0.0
  %530 = vmatpush1.msra.mxu0 0.0
  %531 = vmatprep.subr.mxu0 0.0
  %532 = vmatpush1.msra.mxu0 0.0
  %533 = vmatprep.subr.mxu0 0.0
  %534 = vmatpush1.msra.mxu0 0.0
  %535 = vmatprep.subr.mxu0 0.0
  %536 = vmatpush1.msra.mxu0 0.0
  %537 = vmatprep.subr.mxu0 0.0
  %538 = vmatpush1.msra.mxu0 0.0
  %539 = vmatprep.subr.mxu0 0.0
  %540 = vmatpush1.msra.mxu0 0.0
  %541 = vmatprep.subr.mxu0 0.0
  %542 = vmatpush1.msra.mxu0 0.0
  %543 = vmatprep.subr.mxu0 0.0
  %544 = vmatpush1.msra.mxu0 0.0
  %545 = vmatprep.subr.mxu0 0.0
  %546 = vmatpush1.msra.mxu0 0.0
  %547 = vmatprep.subr.mxu0 0.0
  %548 = vmatpush1.msra.mxu0 0.0
  %549 = vmatprep.subr.mxu0 0.0
  %550 = vmatpush1.msra.mxu0 0.0
  %551 = vmatprep.subr.mxu0 0.0
  %552 = vmatpush1.msra.mxu0 0.0
  %553 = vmatprep.subr.mxu0 0.0
  %554 = vmatpush1.msra.mxu0 0.0
  %555 = vmatprep.subr.mxu0 0.0
  %556 = vmatpush1.msra.mxu0 0.0
  %557 = vmatprep.mubr.f32.mxu0 0.0
  %558 = vmatmul.mubr.f32.gmra.mrb[0].mxu0 %v491
  %v559 = vpop.f32.mrb[0].mxu0
  %v560 = vadd.f32 0.0, %v559
  %v561 = vpop.f32.mrb[0].mxu0
  %562 = vdwg.mxu0
  %v563 = vadd.f32 %v490, %v560
  %v564 = vtanh.pop %v563
  %v565 = vmul.f32 %v564, 0.5
  %v566 = vadd.f32 %v565, 0.5
  %v567 = vsel %vm188, %v564, %v566
  %v568 = vmul.f32 %v567, %v478
  %570 = vrot.lane.b32.xlu0 %v567, 64
  %v571 = vpop.permute.xlu0 %570
  %v573 = vmul.f32 %v567, %v571
  %575 = vrot.lane.b32.xlu0 %v573, 32
  %v576 = vpop.permute.xlu0 %575
  %v578 = vadd.f32 %v568, %v576
  %v579 = vtanh.pop %v578
  %581 = vrot.lane.b32.xlu0 %v579, 64
  %v582 = vpop.permute.xlu0 %581
  %v584 = vmul.f32 %v567, %v582
  %586 = vrot.lane.b32.xlu0 %v584, 32
  %v587 = vpop.permute.xlu0 %586
  %589 = vst.msk [vmem:[#allocation3 + $0x18] sm:$0xff] %vm42, %v587
  %v590 = vld [vmem:[#allocation2 + $0x20] sm:$0xff]
  %v591 = vsel %vm42, %v587, 0
  %593 = vmatprep.subr.mxu0 0.0
  %594 = vmatpush1.msra.mxu0 %v180
  %595 = vmatprep.subr.mxu0 0.0
  %596 = vmatpush1.msra.mxu0 %v181
  %597 = vmatprep.subr.mxu0 0.0
  %598 = vmatpush1.msra.mxu0 %v182
  %599 = vmatprep.subr.mxu0 0.0
  %600 = vmatpush1.msra.mxu0 %v183
  %601 = vmatprep.subr.mxu0 0.0
  %602 = vmatpush1.msra.mxu0 0.0
  %603 = vmatprep.subr.mxu0 0.0
  %604 = vmatpush1.msra.mxu0 0.0
  %605 = vmatprep.subr.mxu0 0.0
  %606 = vmatpush1.msra.mxu0 0.0
  %607 = vmatprep.subr.mxu0 0.0
  %608 = vmatpush1.msra.mxu0 0.0
  %609 = vmatprep.subr.mxu0 0.0
  %610 = vmatpush1.msra.mxu0 0.0
  %611 = vmatprep.subr.mxu0 0.0
  %612 = vmatpush1.msra.mxu0 0.0
  %613 = vmatprep.subr.mxu0 0.0
  %614 = vmatpush1.msra.mxu0 0.0
  %615 = vmatprep.subr.mxu0 0.0
  %616 = vmatpush1.msra.mxu0 0.0
  %617 = vmatprep.subr.mxu0 0.0
  %618 = vmatpush1.msra.mxu0 0.0
  %619 = vmatprep.subr.mxu0 0.0
  %620 = vmatpush1.msra.mxu0 0.0
  %621 = vmatprep.subr.mxu0 0.0
  %622 = vmatpush1.msra.mxu0 0.0
  %623 = vmatprep.subr.mxu0 0.0
  %624 = vmatpush1.msra.mxu0 0.0
  %625 = vmatprep.subr.mxu0 0.0
  %626 = vmatpush1.msra.mxu0 0.0
  %627 = vmatprep.subr.mxu0 0.0
  %628 = vmatpush1.msra.mxu0 0.0
  %629 = vmatprep.subr.mxu0 0.0
  %630 = vmatpush1.msra.mxu0 0.0
  %631 = vmatprep.subr.mxu0 0.0
  %632 = vmatpush1.msra.mxu0 0.0
  %633 = vmatprep.subr.mxu0 0.0
  %634 = vmatpush1.msra.mxu0 0.0
  %635 = vmatprep.subr.mxu0 0.0
  %636 = vmatpush1.msra.mxu0 0.0
  %637 = vmatprep.subr.mxu0 0.0
  %638 = vmatpush1.msra.mxu0 0.0
  %639 = vmatprep.subr.mxu0 0.0
  %640 = vmatpush1.msra.mxu0 0.0
  %641 = vmatprep.subr.mxu0 0.0
  %642 = vmatpush1.msra.mxu0 0.0
  %643 = vmatprep.subr.mxu0 0.0
  %644 = vmatpush1.msra.mxu0 0.0
  %645 = vmatprep.subr.mxu0 0.0
  %646 = vmatpush1.msra.mxu0 0.0
  %647 = vmatprep.subr.mxu0 0.0
  %648 = vmatpush1.msra.mxu0 0.0
  %649 = vmatprep.subr.mxu0 0.0
  %650 = vmatpush1.msra.mxu0 0.0
  %651 = vmatprep.subr.mxu0 0.0
  %652 = vmatpush1.msra.mxu0 0.0
  %653 = vmatprep.subr.mxu0 0.0
  %654 = vmatpush1.msra.mxu0 0.0
  %655 = vmatprep.subr.mxu0 0.0
  %656 = vmatpush1.msra.mxu0 0.0
  %657 = vmatprep.mubr.f32.mxu0 0.0
  %658 = vmatmul.mubr.f32.gmra.mrb[0].mxu0 %v591
  %v659 = vpop.f32.mrb[0].mxu0
  %v660 = vadd.f32 0.0, %v659
  %v661 = vpop.f32.mrb[0].mxu0
  %662 = vdwg.mxu0
  %v663 = vadd.f32 %v590, %v660
  %v664 = vtanh.pop %v663
  %v665 = vmul.f32 %v664, 0.5
  %v666 = vadd.f32 %v665, 0.5
  %v667 = vsel %vm188, %v664, %v666
  %v668 = vmul.f32 %v667, %v578
  %670 = vrot.lane.b32.xlu0 %v667, 64
  %v671 = vpop.permute.xlu0 %670
  %v673 = vmul.f32 %v667, %v671
  %675 = vrot.lane.b32.xlu0 %v673, 32
  %v676 = vpop.permute.xlu0 %675
  %v678 = vadd.f32 %v668, %v676
  %v679 = vtanh.pop %v678
  %681 = vrot.lane.b32.xlu0 %v679, 64
  %v682 = vpop.permute.xlu0 %681
  %v684 = vmul.f32 %v667, %v682
  %686 = vrot.lane.b32.xlu0 %v684, 32
  %v687 = vpop.permute.xlu0 %686
  %689 = vst.msk [vmem:[#allocation3 + $0x20] sm:$0xff] %vm42, %v687
  %v690 = vld [vmem:[#allocation2 + $0x28] sm:$0xff]
  %v691 = vsel %vm42, %v687, 0
  %693 = vmatprep.subr.mxu0 0.0
  %694 = vmatpush1.msra.mxu0 %v180
  %695 = vmatprep.subr.mxu0 0.0
  %696 = vmatpush1.msra.mxu0 %v181
  %697 = vmatprep.subr.mxu0 0.0
  %698 = vmatpush1.msra.mxu0 %v182
  %699 = vmatprep.subr.mxu0 0.0
  %700 = vmatpush1.msra.mxu0 %v183
  %701 = vmatprep.subr.mxu0 0.0
  %702 = vmatpush1.msra.mxu0 0.0
  %703 = vmatprep.subr.mxu0 0.0
  %704 = vmatpush1.msra.mxu0 0.0
  %705 = vmatprep.subr.mxu0 0.0
  %706 = vmatpush1.msra.mxu0 0.0
  %707 = vmatprep.subr.mxu0 0.0
  %708 = vmatpush1.msra.mxu0 0.0
  %709 = vmatprep.subr.mxu0 0.0
  %710 = vmatpush1.msra.mxu0 0.0
  %711 = vmatprep.subr.mxu0 0.0
  %712 = vmatpush1.msra.mxu0 0.0
  %713 = vmatprep.subr.mxu0 0.0
  %714 = vmatpush1.msra.mxu0 0.0
  %715 = vmatprep.subr.mxu0 0.0
  %716 = vmatpush1.msra.mxu0 0.0
  %717 = vmatprep.subr.mxu0 0.0
  %718 = vmatpush1.msra.mxu0 0.0
  %719 = vmatprep.subr.mxu0 0.0
  %720 = vmatpush1.msra.mxu0 0.0
  %721 = vmatprep.subr.mxu0 0.0
  %722 = vmatpush1.msra.mxu0 0.0
  %723 = vmatprep.subr.mxu0 0.0
  %724 = vmatpush1.msra.mxu0 0.0
  %725 = vmatprep.subr.mxu0 0.0
  %726 = vmatpush1.msra.mxu0 0.0
  %727 = vmatprep.subr.mxu0 0.0
  %728 = vmatpush1.msra.mxu0 0.0
  %729 = vmatprep.subr.mxu0 0.0
  %730 = vmatpush1.msra.mxu0 0.0
  %731 = vmatprep.subr.mxu0 0.0
  %732 = vmatpush1.msra.mxu0 0.0
  %733 = vmatprep.subr.mxu0 0.0
  %734 = vmatpush1.msra.mxu0 0.0
  %735 = vmatprep.subr.mxu0 0.0
  %736 = vmatpush1.msra.mxu0 0.0
  %737 = vmatprep.subr.mxu0 0.0
  %738 = vmatpush1.msra.mxu0 0.0
  %739 = vmatprep.subr.mxu0 0.0
  %740 = vmatpush1.msra.mxu0 0.0
  %741 = vmatprep.subr.mxu0 0.0
  %742 = vmatpush1.msra.mxu0 0.0
  %743 = vmatprep.subr.mxu0 0.0
  %744 = vmatpush1.msra.mxu0 0.0
  %745 = vmatprep.subr.mxu0 0.0
  %746 = vmatpush1.msra.mxu0 0.0
  %747 = vmatprep.subr.mxu0 0.0
  %748 = vmatpush1.msra.mxu0 0.0
  %749 = vmatprep.subr.mxu0 0.0
  %750 = vmatpush1.msra.mxu0 0.0
  %751 = vmatprep.subr.mxu0 0.0
  %752 = vmatpush1.msra.mxu0 0.0
  %753 = vmatprep.subr.mxu0 0.0
  %754 = vmatpush1.msra.mxu0 0.0
  %755 = vmatprep.subr.mxu0 0.0
  %756 = vmatpush1.msra.mxu0 0.0
  %757 = vmatprep.mubr.f32.mxu0 0.0
  %758 = vmatmul.mubr.f32.gmra.mrb[0].mxu0 %v691
  %v759 = vpop.f32.mrb[0].mxu0
  %v760 = vadd.f32 0.0, %v759
  %v761 = vpop.f32.mrb[0].mxu0
  %762 = vdwg.mxu0
  %v763 = vadd.f32 %v690, %v760
  %v764 = vtanh.pop %v763
  %v765 = vmul.f32 %v764, 0.5
  %v766 = vadd.f32 %v765, 0.5
  %v767 = vsel %vm188, %v764, %v766
  %v768 = vmul.f32 %v767, %v678
  %770 = vrot.lane.b32.xlu0 %v767, 64
  %v771 = vpop.permute.xlu0 %770
  %v773 = vmul.f32 %v767, %v771
  %775 = vrot.lane.b32.xlu0 %v773, 32
  %v776 = vpop.permute.xlu0 %775
  %v778 = vadd.f32 %v768, %v776
  %v779 = vtanh.pop %v778
  %781 = vrot.lane.b32.xlu0 %v779, 64
  %v782 = vpop.permute.xlu0 %781
  %v784 = vmul.f32 %v767, %v782
  %786 = vrot.lane.b32.xlu0 %v784, 32
  %v787 = vpop.permute.xlu0 %786
  %789 = vst.msk [vmem:[#allocation3 + $0x28] sm:$0xff] %vm42, %v787
  %v790 = vld [vmem:[#allocation2 + $0x30] sm:$0xff]
  %v791 = vsel %vm42, %v787, 0
  %793 = vmatprep.subr.mxu0 0.0
  %794 = vmatpush1.msra.mxu0 %v180
  %795 = vmatprep.subr.mxu0 0.0
  %796 = vmatpush1.msra.mxu0 %v181
  %797 = vmatprep.subr.mxu0 0.0
  %798 = vmatpush1.msra.mxu0 %v182
  %799 = vmatprep.subr.mxu0 0.0
  %800 = vmatpush1.msra.mxu0 %v183
  %801 = vmatprep.subr.mxu0 0.0
  %802 = vmatpush1.msra.mxu0 0.0
  %803 = vmatprep.subr.mxu0 0.0
  %804 = vmatpush1.msra.mxu0 0.0
  %805 = vmatprep.subr.mxu0 0.0
  %806 = vmatpush1.msra.mxu0 0.0
  %807 = vmatprep.subr.mxu0 0.0
  %808 = vmatpush1.msra.mxu0 0.0
  %809 = vmatprep.subr.mxu0 0.0
  %810 = vmatpush1.msra.mxu0 0.0
  %811 = vmatprep.subr.mxu0 0.0
  %812 = vmatpush1.msra.mxu0 0.0
  %813 = vmatprep.subr.mxu0 0.0
  %814 = vmatpush1.msra.mxu0 0.0
  %815 = vmatprep.subr.mxu0 0.0
  %816 = vmatpush1.msra.mxu0 0.0
  %817 = vmatprep.subr.mxu0 0.0
  %818 = vmatpush1.msra.mxu0 0.0
  %819 = vmatprep.subr.mxu0 0.0
  %820 = vmatpush1.msra.mxu0 0.0
  %821 = vmatprep.subr.mxu0 0.0
  %822 = vmatpush1.msra.mxu0 0.0
  %823 = vmatprep.subr.mxu0 0.0
  %824 = vmatpush1.msra.mxu0 0.0
  %825 = vmatprep.subr.mxu0 0.0
  %826 = vmatpush1.msra.mxu0 0.0
  %827 = vmatprep.subr.mxu0 0.0
  %828 = vmatpush1.msra.mxu0 0.0
  %829 = vmatprep.subr.mxu0 0.0
  %830 = vmatpush1.msra.mxu0 0.0
  %831 = vmatprep.subr.mxu0 0.0
  %832 = vmatpush1.msra.mxu0 0.0
  %833 = vmatprep.subr.mxu0 0.0
  %834 = vmatpush1.msra.mxu0 0.0
  %835 = vmatprep.subr.mxu0 0.0
  %836 = vmatpush1.msra.mxu0 0.0
  %837 = vmatprep.subr.mxu0 0.0
  %838 = vmatpush1.msra.mxu0 0.0
  %839 = vmatprep.subr.mxu0 0.0
  %840 = vmatpush1.msra.mxu0 0.0
  %841 = vmatprep.subr.mxu0 0.0
  %842 = vmatpush1.msra.mxu0 0.0
  %843 = vmatprep.subr.mxu0 0.0
  %844 = vmatpush1.msra.mxu0 0.0
  %845 = vmatprep.subr.mxu0 0.0
  %846 = vmatpush1.msra.mxu0 0.0
  %847 = vmatprep.subr.mxu0 0.0
  %848 = vmatpush1.msra.mxu0 0.0
  %849 = vmatprep.subr.mxu0 0.0
  %850 = vmatpush1.msra.mxu0 0.0
  %851 = vmatprep.subr.mxu0 0.0
  %852 = vmatpush1.msra.mxu0 0.0
  %853 = vmatprep.subr.mxu0 0.0
  %854 = vmatpush1.msra.mxu0 0.0
  %855 = vmatprep.subr.mxu0 0.0
  %856 = vmatpush1.msra.mxu0 0.0
  %857 = vmatprep.mubr.f32.mxu0 0.0
  %858 = vmatmul.mubr.f32.gmra.mrb[0].mxu0 %v791
  %v859 = vpop.f32.mrb[0].mxu0
  %v860 = vadd.f32 0.0, %v859
  %v861 = vpop.f32.mrb[0].mxu0
  %862 = vdwg.mxu0
  %v863 = vadd.f32 %v790, %v860
  %v864 = vtanh.pop %v863
  %v865 = vmul.f32 %v864, 0.5
  %v866 = vadd.f32 %v865, 0.5
  %v867 = vsel %vm188, %v864, %v866
  %v868 = vmul.f32 %v867, %v778
  %870 = vrot.lane.b32.xlu0 %v867, 64
  %v871 = vpop.permute.xlu0 %870
  %v873 = vmul.f32 %v867, %v871
  %875 = vrot.lane.b32.xlu0 %v873, 32
  %v876 = vpop.permute.xlu0 %875
  %v878 = vadd.f32 %v868, %v876
  %v879 = vtanh.pop %v878
  %881 = vrot.lane.b32.xlu0 %v879, 64
  %v882 = vpop.permute.xlu0 %881
  %v884 = vmul.f32 %v867, %v882
  %886 = vrot.lane.b32.xlu0 %v884, 32
  %v887 = vpop.permute.xlu0 %886
  %889 = vst.msk [vmem:[#allocation3 + $0x30] sm:$0xff] %vm42, %v887
  %v890 = vld [vmem:[#allocation2 + $0x38] sm:$0xff]
  %v891 = vsel %vm42, %v887, 0
  %893 = vmatprep.subr.mxu0 0.0
  %894 = vmatpush1.msra.mxu0 %v180
  %895 = vmatprep.subr.mxu0 0.0
  %896 = vmatpush1.msra.mxu0 %v181
  %897 = vmatprep.subr.mxu0 0.0
  %898 = vmatpush1.msra.mxu0 %v182
  %899 = vmatprep.subr.mxu0 0.0
  %900 = vmatpush1.msra.mxu0 %v183
  %901 = vmatprep.subr.mxu0 0.0
  %902 = vmatpush1.msra.mxu0 0.0
  %903 = vmatprep.subr.mxu0 0.0
  %904 = vmatpush1.msra.mxu0 0.0
  %905 = vmatprep.subr.mxu0 0.0
  %906 = vmatpush1.msra.mxu0 0.0
  %907 = vmatprep.subr.mxu0 0.0
  %908 = vmatpush1.msra.mxu0 0.0
  %909 = vmatprep.subr.mxu0 0.0
  %910 = vmatpush1.msra.mxu0 0.0
  %911 = vmatprep.subr.mxu0 0.0
  %912 = vmatpush1.msra.mxu0 0.0
  %913 = vmatprep.subr.mxu0 0.0
  %914 = vmatpush1.msra.mxu0 0.0
  %915 = vmatprep.subr.mxu0 0.0
  %916 = vmatpush1.msra.mxu0 0.0
  %917 = vmatprep.subr.mxu0 0.0
  %918 = vmatpush1.msra.mxu0 0.0
  %919 = vmatprep.subr.mxu0 0.0
  %920 = vmatpush1.msra.mxu0 0.0
  %921 = vmatprep.subr.mxu0 0.0
  %922 = vmatpush1.msra.mxu0 0.0
  %923 = vmatprep.subr.mxu0 0.0
  %924 = vmatpush1.msra.mxu0 0.0
  %925 = vmatprep.subr.mxu0 0.0
  %926 = vmatpush1.msra.mxu0 0.0
  %927 = vmatprep.subr.mxu0 0.0
  %928 = vmatpush1.msra.mxu0 0.0
  %929 = vmatprep.subr.mxu0 0.0
  %930 = vmatpush1.msra.mxu0 0.0
  %931 = vmatprep.subr.mxu0 0.0
  %932 = vmatpush1.msra.mxu0 0.0
  %933 = vmatprep.subr.mxu0 0.0
  %934 = vmatpush1.msra.mxu0 0.0
  %935 = vmatprep.subr.mxu0 0.0
  %936 = vmatpush1.msra.mxu0 0.0
  %937 = vmatprep.subr.mxu0 0.0
  %938 = vmatpush1.msra.mxu0 0.0
  %939 = vmatprep.subr.mxu0 0.0
  %940 = vmatpush1.msra.mxu0 0.0
  %941 = vmatprep.subr.mxu0 0.0
  %942 = vmatpush1.msra.mxu0 0.0
  %943 = vmatprep.subr.mxu0 0.0
  %944 = vmatpush1.msra.mxu0 0.0
  %945 = vmatprep.subr.mxu0 0.0
  %946 = vmatpush1.msra.mxu0 0.0
  %947 = vmatprep.subr.mxu0 0.0
  %948 = vmatpush1.msra.mxu0 0.0
  %949 = vmatprep.subr.mxu0 0.0
  %950 = vmatpush1.msra.mxu0 0.0
  %951 = vmatprep.subr.mxu0 0.0
  %952 = vmatpush1.msra.mxu0 0.0
  %953 = vmatprep.subr.mxu0 0.0
  %954 = vmatpush1.msra.mxu0 0.0
  %955 = vmatprep.subr.mxu0 0.0
  %956 = vmatpush1.msra.mxu0 0.0
  %957 = vmatprep.mubr.f32.mxu0 0.0
  %958 = vmatmul.mubr.f32.gmra.mrb[0].mxu0 %v891
  %v959 = vpop.f32.mrb[0].mxu0
  %v960 = vadd.f32 0.0, %v959
  %v961 = vpop.f32.mrb[0].mxu0
  %962 = vdwg.mxu0
  %v963 = vadd.f32 %v890, %v960
  %v964 = vtanh.pop %v963
  %v965 = vmul.f32 %v964, 0.5
  %v966 = vadd.f32 %v965, 0.5
  %v967 = vsel %vm188, %v964, %v966
  %v968 = vmul.f32 %v967, %v878
  %970 = vrot.lane.b32.xlu0 %v967, 64
  %v971 = vpop.permute.xlu0 %970
  %v973 = vmul.f32 %v967, %v971
  %975 = vrot.lane.b32.xlu0 %v973, 32
  %v976 = vpop.permute.xlu0 %975
  %v978 = vadd.f32 %v968, %v976
  %v979 = vtanh.pop %v978
  %981 = vrot.lane.b32.xlu0 %v979, 64
  %v982 = vpop.permute.xlu0 %981
  %v984 = vmul.f32 %v967, %v982
  %986 = vrot.lane.b32.xlu0 %v984, 32
  %v987 = vpop.permute.xlu0 %986
  %989 = vst.msk [vmem:[#allocation3 + $0x38] sm:$0xff] %vm42, %v987
  %v990 = vld [vmem:[#allocation3] sm:$0xff]
  %v991 = vld [vmem:[#allocation3 + $0x8] sm:$0xff]
  %v992 = vld [vmem:[#allocation3 + $0x10] sm:$0xff]
  %v993 = vld [vmem:[#allocation3 + $0x18] sm:$0xff]
  %v994 = vld [vmem:[#allocation3 + $0x20] sm:$0xff]
  %v995 = vld [vmem:[#allocation3 + $0x28] sm:$0xff]
  %v996 = vld [vmem:[#allocation3 + $0x30] sm:$0xff]
  %v997 = vld [vmem:[#allocation3 + $0x38] sm:$0xff]
  %v998 = vld [vmem:[%s4] sm:$0xff]
  %v999 = vld [vmem:[%s4 + $0x8] sm:$0xff]
  %v1000 = vld [vmem:[%s4 + $0x10] sm:$0xff]
  %v1001 = vld [vmem:[%s4 + $0x18] sm:$0xff]
  %v1002 = vld [vmem:[%s5] sm:$0x1]
  %v1004 = vlaneseq
  %v1005 = vshrl.u32 %v1004, 7
  %v1006 = vsub.s32 0, %v1005
  %v1007 = vrot.slane %v1002, %v1006
  %v1010 = vsel %vm42, %v990, 0
  %v1013 = vsel %vm42, %v991, 0
  %v1016 = vsel %vm42, %v992, 0
  %v1019 = vsel %vm42, %v993, 0
  %v1022 = vsel %vm42, %v994, 0
  %v1025 = vsel %vm42, %v995, 0
  %v1028 = vsel %vm42, %v996, 0
  %v1031 = vsel %vm42, %v997, 0
  %1033 = vmatprep.subr.mxu0 0.0
  %1034 = vmatpush1.msra.mxu0 %v998
  %1035 = vmatprep.subr.mxu0 0.0
  %1036 = vmatpush1.msra.mxu0 %v999
  %1037 = vmatprep.subr.mxu0 0.0
  %1038 = vmatpush1.msra.mxu0 %v1000
  %1039 = vmatprep.subr.mxu0 0.0
  %1040 = vmatpush1.msra.mxu0 %v1001
  %1041 = vmatprep.subr.mxu0 0.0
  %1042 = vmatpush1.msra.mxu0 0.0
  %1043 = vmatprep.subr.mxu0 0.0
  %1044 = vmatpush1.msra.mxu0 0.0
  %1045 = vmatprep.subr.mxu0 0.0
  %1046 = vmatpush1.msra.mxu0 0.0
  %1047 = vmatprep.subr.mxu0 0.0
  %1048 = vmatpush1.msra.mxu0 0.0
  %1049 = vmatprep.subr.mxu0 0.0
  %1050 = vmatpush1.msra.mxu0 0.0
  %1051 = vmatprep.subr.mxu0 0.0
  %1052 = vmatpush1.msra.mxu0 0.0
  %1053 = vmatprep.subr.mxu0 0.0
  %1054 = vmatpush1.msra.mxu0 0.0
  %1055 = vmatprep.subr.mxu0 0.0
  %1056 = vmatpush1.msra.mxu0 0.0
  %1057 = vmatprep.subr.mxu0 0.0
  %1058 = vmatpush1.msra.mxu0 0.0
  %1059 = vmatprep.subr.mxu0 0.0
  %1060 = vmatpush1.msra.mxu0 0.0
  %1061 = vmatprep.subr.mxu0 0.0
  %1062 = vmatpush1.msra.mxu0 0.0
  %1063 = vmatprep.subr.mxu0 0.0
  %1064 = vmatpush1.msra.mxu0 0.0
  %1065 = vmatprep.subr.mxu0 0.0
  %1066 = vmatpush1.msra.mxu0 0.0
  %1067 = vmatprep.subr.mxu0 0.0
  %1068 = vmatpush1.msra.mxu0 0.0
  %1069 = vmatprep.subr.mxu0 0.0
  %1070 = vmatpush1.msra.mxu0 0.0
  %1071 = vmatprep.subr.mxu0 0.0
  %1072 = vmatpush1.msra.mxu0 0.0
  %1073 = vmatprep.subr.mxu0 0.0
  %1074 = vmatpush1.msra.mxu0 0.0
  %1075 = vmatprep.subr.mxu0 0.0
  %1076 = vmatpush1.msra.mxu0 0.0
  %1077 = vmatprep.subr.mxu0 0.0
  %1078 = vmatpush1.msra.mxu0 0.0
  %1079 = vmatprep.subr.mxu0 0.0
  %1080 = vmatpush1.msra.mxu0 0.0
  %1081 = vmatprep.subr.mxu0 0.0
  %1082 = vmatpush1.msra.mxu0 0.0
  %1083 = vmatprep.subr.mxu0 0.0
  %1084 = vmatpush1.msra.mxu0 0.0
  %1085 = vmatprep.subr.mxu0 0.0
  %1086 = vmatpush1.msra.mxu0 0.0
  %1087 = vmatprep.subr.mxu0 0.0
  %1088 = vmatpush1.msra.mxu0 0.0
  %1089 = vmatprep.subr.mxu0 0.0
  %1090 = vmatpush1.msra.mxu0 0.0
  %1091 = vmatprep.subr.mxu0 0.0
  %1092 = vmatpush1.msra.mxu0 0.0
  %1093 = vmatprep.subr.mxu0 0.0
  %1094 = vmatpush1.msra.mxu0 0.0
  %1095 = vmatprep.subr.mxu0 0.0
  %1096 = vmatpush1.msra.mxu0 0.0
  %1097 = vmatprep.mubr.f32.mxu0 0.0
  %1098 = vmatmul.mubr.f32.gmra.mrb[0].mxu0 %v1010
  %v1099 = vpop.f32.mrb[0].mxu0
  %v1100 = vadd.f32 %v1007, %v1099
  %v1101 = vpop.f32.mrb[0].mxu0
  %1102 = vmatprep.mubr.f32.mxu0 0.0
  %1103 = vmatmul.mubr.f32.gmra.mrb[0].mxu0 %v1013
  %v1104 = vpop.f32.mrb[0].mxu0
  %v1105 = vadd.f32 %v1007, %v1104
  %v1106 = vpop.f32.mrb[0].mxu0
  %1107 = vmatprep.mubr.f32.mxu0 0.0
  %1108 = vmatmul.mubr.f32.gmra.mrb[0].mxu0 %v1016
  %v1109 = vpop.f32.mrb[0].mxu0
  %v1110 = vadd.f32 %v1007, %v1109
  %v1111 = vpop.f32.mrb[0].mxu0
  %1112 = vmatprep.mubr.f32.mxu0 0.0
  %1113 = vmatmul.mubr.f32.gmra.mrb[0].mxu0 %v1019
  %v1114 = vpop.f32.mrb[0].mxu0
  %v1115 = vadd.f32 %v1007, %v1114
  %v1116 = vpop.f32.mrb[0].mxu0
  %1117 = vmatprep.mubr.f32.mxu0 0.0
  %1118 = vmatmul.mubr.f32.gmra.mrb[0].mxu0 %v1022
  %v1119 = vpop.f32.mrb[0].mxu0
  %v1120 = vadd.f32 %v1007, %v1119
  %v1121 = vpop.f32.mrb[0].mxu0
  %1122 = vmatprep.mubr.f32.mxu0 0.0
  %1123 = vmatmul.mubr.f32.gmra.mrb[0].mxu0 %v1025
  %v1124 = vpop.f32.mrb[0].mxu0
  %v1125 = vadd.f32 %v1007, %v1124
  %v1126 = vpop.f32.mrb[0].mxu0
  %1127 = vmatprep.mubr.f32.mxu0 0.0
  %1128 = vmatmul.mubr.f32.gmra.mrb[0].mxu0 %v1028
  %v1129 = vpop.f32.mrb[0].mxu0
  %v1130 = vadd.f32 %v1007, %v1129
  %v1131 = vpop.f32.mrb[0].mxu0
  %1132 = vmatprep.mubr.f32.mxu0 0.0
  %1133 = vmatmul.mubr.f32.gmra.mrb[0].mxu0 %v1031
  %v1134 = vpop.f32.mrb[0].mxu0
  %v1135 = vadd.f32 %v1007, %v1134
  %v1136 = vpop.f32.mrb[0].mxu0
  %1137 = vdwg.mxu0
  %1138 = vst [vmem:[%s6] sm:$0xff] %v1100
  %1139 = vst [vmem:[%s6 + $0x8] sm:$0xff] %v1105
  %1140 = vst [vmem:[%s6 + $0x10] sm:$0xff] %v1110
  %1141 = vst [vmem:[%s6 + $0x18] sm:$0xff] %v1115
  %1142 = vst [vmem:[%s6 + $0x20] sm:$0xff] %v1120
  %1143 = vst [vmem:[%s6 + $0x28] sm:$0xff] %v1125
  %1144 = vst [vmem:[%s6 + $0x30] sm:$0xff] %v1130
  %1145 = vst [vmem:[%s6 + $0x38] sm:$0xff] %v1135
  // Predicated region
  $region26: #{decoder_forward.1} parent=0 // pred_check
    _
  $region27: #{decoder_forward.1} parent=0 // pred_check_branch
    %1147 = sbr.rel (0) target = $region29
  $region28: #{decoder_forward.1} parent=0 // pred_region
    _
  $region29: #{decoder_forward.1} parent=0 // pred_fallthru
    _
  // Predicated region
  $region30: #{decoder_forward.1} parent=0 // pred_check
    _
  $region31: #{decoder_forward.1} parent=0 // pred_check_branch
    %1149 = sbr.rel (0) target = $region33
  $region32: #{decoder_forward.1} parent=0 // pred_region
    _
  $region33: #{decoder_forward.1} parent=0 // pred_fallthru
    _

</llo_original>
